<compile_context>
chip_gen: v7x
topology: tpu7x:2x2x1
jax: 0.10.0
libtpu: 0.0.40
codegen_flags: <defaults>
</compile_context>

<pallas_src>
import jax
import jax.numpy as jnp
from jax.experimental import pallas as pl
from jax.experimental.pallas import tpu as pltpu


def _gat_kernel(h_ref, rhs_ref, bias_ref, out_ref, attn_ref):
    tb, n, f_in = h_ref.shape
    n_head = attn_ref.shape[2] // n
    f_out = out_ref.shape[2] // n_head

    hm = h_ref[...].reshape(tb * n, f_in)          # (TB*n, f_in): one big MXU LHS
    bias = bias_ref[...]                           # (1, f_out)

    # Single fused MXU pass for every head:
    #   cols [0 : H*f_out)           -> h_prime for all heads (lane-concatenated)
    #   cols [H*f_out : H*f_out+H)   -> attn_src column per head
    #   cols [H*f_out+H : H*f_out+2H)-> attn_dst column per head
    hp_ext = jnp.dot(hm, rhs_ref[...], preferred_element_type=jnp.float32)
    hp_all = hp_ext[:, : n_head * f_out]                                  # (TB*n, H*f_out)
    src_all = hp_ext[:, n_head * f_out: n_head * f_out + n_head]          # (TB*n, H)
    dst_all = hp_ext[:, n_head * f_out + n_head:]                         # (TB*n, H)

    for t in range(tb):                            # attention is block-diagonal per batch
        src_t = src_all[t * n:(t + 1) * n, :]      # (n, H)
        dst_t = dst_all[t * n:(t + 1) * n, :].T    # (H, n): one small XLU transpose per tile
        hp_t = hp_all[t * n:(t + 1) * n, :]        # (n, H*f_out)

        outs = []
        atts = []
        for k in range(n_head):                    # n_head is small: static unroll
            att = src_t[:, k:k + 1] + dst_t[k:k + 1, :]        # attn[i, j] = src[i] + dst[j]
            att = jnp.where(att >= 0, att, 0.2 * att)          # LeakyReLU(0.2)
            m = jnp.max(att, axis=-1, keepdims=True)           # stable softmax
            e = jnp.exp(att - m)
            att = e * pl.reciprocal(jnp.sum(e, axis=-1, keepdims=True), approx=False)
            # TODO(synk): training-mode attention dropout (pltpu.prng_*) not implemented;
            # eval-mode dropout is the identity.
            o = jnp.dot(att, hp_t[:, k * f_out:(k + 1) * f_out],
                        preferred_element_type=jnp.float32) + bias
            outs.append(o)
            atts.append(att)

        # One lane-dense store per tile per output (instead of n_head narrow stores).
        out_ref[t, :, :] = jnp.concatenate(outs, axis=-1)
        attn_ref[t, :, :] = jnp.concatenate(atts, axis=-1)


def seq_batch_multi_head_graph_attention(h, w, a_src, a_dst, bias):
    """Pallas implementation of seqBatchMultiHeadGraphAttention.forward (eval mode)."""
    bs, n, f_in = h.shape
    n_head, _, f_out = w.shape

    h = h.astype(jnp.float32)
    w = w.astype(jnp.float32)

    # Fused, lane-concatenated RHS so that
    #   h @ [W_cat | W@a_src | W@a_dst] == [h@w_k ... | (h@w_k)@a_src_k ... | (h@w_k)@a_dst_k ...]
    # (associativity; differs from the reference only by f32 rounding).
    w_cat = jnp.transpose(w, (1, 0, 2)).reshape(f_in, n_head * f_out)   # (f_in, H*f_out)
    s_cat = jnp.matmul(w, a_src.astype(jnp.float32))[..., 0].T          # (f_in, H)
    d_cat = jnp.matmul(w, a_dst.astype(jnp.float32))[..., 0].T          # (f_in, H)
    rhs = jnp.concatenate([w_cat, s_cat, d_cat], axis=-1)               # (f_in, H*f_out + 2H)
    bias2d = bias.reshape(1, f_out).astype(jnp.float32)

    # Batch tile: aim for >=128 rows in the fused matmul; keep >=2 parallel grid
    # steps (v7x megacore) when that does not shrink the matmul below 128 rows.
    tb = min(bs, pl.cdiv(128, n))
    while bs % tb:
        tb -= 1
    if bs // tb == 1 and bs % 2 == 0 and (bs // 2) * n >= 128:
        tb = bs // 2
    grid = (bs // tb,)

    flops = bs * n_head * (2 * n * f_in * (f_out + 2) + 6 * n * n + 2 * n * n * f_out)
    bytes_accessed = 4 * (h.size + rhs.size + bias2d.size
                          + bs * n * n_head * f_out + bs * n * n_head * n)
    cost = pl.CostEstimate(flops=flops,
                           transcendentals=bs * n_head * n * n,
                           bytes_accessed=bytes_accessed)

    out_dense, attn_dense = pl.pallas_call(
        _gat_kernel,
        out_shape=(
            jax.ShapeDtypeStruct((bs, n, n_head * f_out), jnp.float32),
            jax.ShapeDtypeStruct((bs, n, n_head * n), jnp.float32),
        ),
        grid_spec=pltpu.PrefetchScalarGridSpec(
            num_scalar_prefetch=0,
            grid=grid,
            in_specs=[
                pl.BlockSpec((tb, n, f_in), lambda b: (b, 0, 0)),                 # h tile
                pl.BlockSpec((f_in, n_head * (f_out + 2)), lambda b: (0, 0)),     # resident fused weights
                pl.BlockSpec((1, f_out), lambda b: (0, 0)),                       # resident bias
            ],
            out_specs=[
                pl.BlockSpec((tb, n, n_head * f_out), lambda b: (b, 0, 0)),       # lane-dense output
                pl.BlockSpec((tb, n, n_head * n), lambda b: (b, 0, 0)),           # lane-dense attn
            ],
        ),
        compiler_params=pltpu.CompilerParams(
            dimension_semantics=("parallel",),
        ),
        cost_estimate=cost,
    )(h, rhs, bias2d)

    # Layout plumbing back to the module's (bs, n_head, n, *) convention.
    output = out_dense.reshape(bs, n, n_head, f_out).transpose(0, 2, 1, 3)
    attn = attn_dense.reshape(bs, n, n_head, n).transpose(0, 2, 1, 3)
    # TODO(synk): for very large n (>= ~2k) on v7x (64 MiB VMEM) tile the attention
    # over query rows (flash-style) instead of holding full (n, n) blocks.
    return output, attn


def _xavier_uniform(key, shape, gain):
    # Matches torch.nn.init.xavier_uniform_ fan computation for 3-D tensors.
    receptive = 1
    for s in shape[2:]:
        receptive *= s
    fan_in = shape[1] * receptive
    fan_out = shape[0] * receptive
    bound = gain * (6.0 / (fan_in + fan_out)) ** 0.5
    return jax.random.uniform(key, shape, jnp.float32, -bound, bound)


def _reference(h, w, a_src, a_dst, bias):
    # Pure-JAX reference of the PyTorch forward (eval mode).
    h_prime = jnp.einsum("bnf,hfo->bhno", h, w)
    attn_src = jnp.einsum("bhno,hoi->bhni", h_prime, a_src)
    attn_dst = jnp.einsum("bhno,hoi->bhni", h_prime, a_dst)
    attn = attn_src + jnp.swapaxes(attn_dst, -1, -2)
    attn = jnp.where(attn >= 0, attn, 0.2 * attn)
    attn = jax.nn.softmax(attn, axis=-1)
    out = jnp.einsum("bhij,bhjo->bhio", attn, h_prime) + bias
    return out, attn


if __name__ == "__main__":
    bs, n, f_in, f_out, n_head = 2, 16, 8, 16, 4

    key = jax.random.PRNGKey(0)
    k_h, k_w, k_src, k_dst = jax.random.split(key, 4)

    h = jax.random.normal(k_h, (bs, n, f_in), jnp.float32)
    w = _xavier_uniform(k_w, (n_head, f_in, f_out), gain=1.414)
    a_src = _xavier_uniform(k_src, (n_head, f_out, 1), gain=1.414)
    a_dst = _xavier_uniform(k_dst, (n_head, f_out, 1), gain=1.414)
    bias = jnp.zeros((f_out,), jnp.float32)  # nn.init.constant_(bias, 0)

    out, attn = jax.jit(seq_batch_multi_head_graph_attention)(h, w, a_src, a_dst, bias)
    jax.block_until_ready(out)
    jax.block_until_ready(attn)

    ref_out, ref_attn = _reference(h, w, a_src, a_dst, bias)
    assert out.shape == (bs, n_head, n, f_out)
    assert attn.shape == (bs, n_head, n, n)
    # f32 everywhere; tolerance only absorbs the h@(w@a) vs (h@w)@a association.
    assert jnp.allclose(out, ref_out, atol=2e-5, rtol=2e-5), \
        float(jnp.max(jnp.abs(out - ref_out)))
    assert jnp.allclose(attn, ref_attn, atol=2e-5, rtol=2e-5), \
        float(jnp.max(jnp.abs(attn - ref_attn)))

    print("KERNEL_OK")
</pallas_src>

<mosaic_0001>
module attributes {stable_mosaic.version = 11 : i64} {
  func.func @_gat_kernel(%arg0: i32, %arg1: memref<2x16x8xf32, #tpu.memory_space<vmem>>, %arg2: memref<8x72xf32, #tpu.memory_space<vmem>>, %arg3: memref<1x16xf32, #tpu.memory_space<vmem>>, %arg4: memref<2x16x64xf32, #tpu.memory_space<vmem>>, %arg5: memref<2x16x64xf32, #tpu.memory_space<vmem>>) attributes {dimension_semantics = [#tpu.dimension_semantics<parallel>], iteration_bounds = array<i64: 1>, scalar_prefetch = 0 : i64, scratch_operands = 0 : i64, tpu.core_type = #tpu.core_type<tc>, window_params = [{transform_indices = @transform_0, window_bounds = array<i64: 2, 16, 8>}, {pipeline_mode = #tpu.pipeline_mode<synchronous>, transform_indices = @transform_1, window_bounds = array<i64: 8, 72>}, {pipeline_mode = #tpu.pipeline_mode<synchronous>, transform_indices = @transform_2, window_bounds = array<i64: 1, 16>}, {transform_indices = @transform_3, window_bounds = array<i64: 2, 16, 64>}, {transform_indices = @transform_4, window_bounds = array<i64: 2, 16, 64>}]} {
    %c0 = arith.constant 0 : index
    %c0_0 = arith.constant 0 : index
    %c0_1 = arith.constant 0 : index
    %0 = vector.load %arg1[%c0, %c0_0, %c0_1] : memref<2x16x8xf32, #tpu.memory_space<vmem>>, vector<2x16x8xf32>
    %1 = vector.shape_cast %0 : vector<2x16x8xf32> to vector<32x8xf32>
    %c0_2 = arith.constant 0 : index
    %c0_3 = arith.constant 0 : index
    %2 = vector.load %arg3[%c0_2, %c0_3] : memref<1x16xf32, #tpu.memory_space<vmem>>, vector<1x16xf32>
    %c0_4 = arith.constant 0 : index
    %c0_5 = arith.constant 0 : index
    %3 = vector.load %arg2[%c0_4, %c0_5] : memref<8x72xf32, #tpu.memory_space<vmem>>, vector<8x72xf32>
    %cst = arith.constant dense<0.000000e+00> : vector<32x72xf32>
    %4 = tpu.matmul %1, %3, %cst {dimension_numbers = #tpu.dot_dimension_numbers<[1], [0], [0], [1], [0, 0, 1, 1], [], []>} : vector<32x8xf32>, vector<8x72xf32>, vector<32x72xf32> -> vector<32x72xf32>
    %5 = vector.extract_strided_slice %4 {offsets = [0, 0], sizes = [32, 64], strides = [1, 1]} : vector<32x72xf32> to vector<32x64xf32>
    %6 = vector.extract_strided_slice %4 {offsets = [0, 64], sizes = [32, 4], strides = [1, 1]} : vector<32x72xf32> to vector<32x4xf32>
    %7 = vector.extract_strided_slice %4 {offsets = [0, 68], sizes = [32, 4], strides = [1, 1]} : vector<32x72xf32> to vector<32x4xf32>
    %8 = vector.extract_strided_slice %6 {offsets = [0, 0], sizes = [16, 4], strides = [1, 1]} : vector<32x4xf32> to vector<16x4xf32>
    %9 = vector.extract_strided_slice %7 {offsets = [0, 0], sizes = [16, 4], strides = [1, 1]} : vector<32x4xf32> to vector<16x4xf32>
    %10 = tpu.transpose %9, [1, 0] : vector<16x4xf32> -> vector<4x16xf32>
    %11 = vector.extract_strided_slice %5 {offsets = [0, 0], sizes = [16, 64], strides = [1, 1]} : vector<32x64xf32> to vector<16x64xf32>
    %12 = vector.extract_strided_slice %8 {offsets = [0, 0], sizes = [16, 1], strides = [1, 1]} : vector<16x4xf32> to vector<16x1xf32>
    %13 = vector.extract_strided_slice %10 {offsets = [0, 0], sizes = [1, 16], strides = [1, 1]} : vector<4x16xf32> to vector<1x16xf32>
    %14 = vector.broadcast %12 : vector<16x1xf32> to vector<16x16xf32>
    %15 = vector.broadcast %13 : vector<1x16xf32> to vector<16x16xf32>
    %16 = arith.addf %14, %15 : vector<16x16xf32>
    %cst_6 = arith.constant 0.000000e+00 : f32
    %17 = vector.broadcast %cst_6 : f32 to vector<16x16xf32>
    %18 = arith.cmpf oge, %16, %17 : vector<16x16xf32>
    %cst_7 = arith.constant 2.000000e-01 : f32
    %19 = vector.broadcast %cst_7 : f32 to vector<16x16xf32>
    %20 = arith.mulf %19, %16 : vector<16x16xf32>
    %21 = arith.select %18, %16, %20 : vector<16x16xi1>, vector<16x16xf32>
    %cst_8 = arith.constant dense<0xFF800000> : vector<16xf32>
    %22 = vector.multi_reduction <maximumf>, %21, %cst_8 [1] : vector<16x16xf32> to vector<16xf32>
    %23 = vector.shape_cast %22 : vector<16xf32> to vector<16x1xf32>
    %24 = vector.broadcast %23 : vector<16x1xf32> to vector<16x16xf32>
    %25 = arith.subf %21, %24 : vector<16x16xf32>
    %26 = math.exp %25 : vector<16x16xf32>
    %cst_9 = arith.constant dense<0.000000e+00> : vector<16xf32>
    %27 = vector.multi_reduction <add>, %26, %cst_9 [1] : vector<16x16xf32> to vector<16xf32>
    %28 = vector.shape_cast %27 : vector<16xf32> to vector<16x1xf32>
    %29 = tpu.reciprocal %28 : vector<16x1xf32> -> vector<16x1xf32>
    %30 = vector.broadcast %29 : vector<16x1xf32> to vector<16x16xf32>
    %31 = arith.mulf %26, %30 : vector<16x16xf32>
    %32 = vector.extract_strided_slice %11 {offsets = [0, 0], sizes = [16, 16], strides = [1, 1]} : vector<16x64xf32> to vector<16x16xf32>
    %cst_10 = arith.constant dense<0.000000e+00> : vector<16x16xf32>
    %33 = tpu.matmul %31, %32, %cst_10 {dimension_numbers = #tpu.dot_dimension_numbers<[1], [0], [0], [1], [0, 0, 1, 1], [], []>} : vector<16x16xf32>, vector<16x16xf32>, vector<16x16xf32> -> vector<16x16xf32>
    %34 = vector.broadcast %2 : vector<1x16xf32> to vector<16x16xf32>
    %35 = arith.addf %33, %34 : vector<16x16xf32>
    %36 = vector.extract_strided_slice %8 {offsets = [0, 1], sizes = [16, 1], strides = [1, 1]} : vector<16x4xf32> to vector<16x1xf32>
    %37 = vector.extract_strided_slice %10 {offsets = [1, 0], sizes = [1, 16], strides = [1, 1]} : vector<4x16xf32> to vector<1x16xf32>
    %38 = vector.broadcast %36 : vector<16x1xf32> to vector<16x16xf32>
    %39 = vector.broadcast %37 : vector<1x16xf32> to vector<16x16xf32>
    %40 = arith.addf %38, %39 : vector<16x16xf32>
    %cst_11 = arith.constant 0.000000e+00 : f32
    %41 = vector.broadcast %cst_11 : f32 to vector<16x16xf32>
    %42 = arith.cmpf oge, %40, %41 : vector<16x16xf32>
    %cst_12 = arith.constant 2.000000e-01 : f32
    %43 = vector.broadcast %cst_12 : f32 to vector<16x16xf32>
    %44 = arith.mulf %43, %40 : vector<16x16xf32>
    %45 = arith.select %42, %40, %44 : vector<16x16xi1>, vector<16x16xf32>
    %cst_13 = arith.constant dense<0xFF800000> : vector<16xf32>
    %46 = vector.multi_reduction <maximumf>, %45, %cst_13 [1] : vector<16x16xf32> to vector<16xf32>
    %47 = vector.shape_cast %46 : vector<16xf32> to vector<16x1xf32>
    %48 = vector.broadcast %47 : vector<16x1xf32> to vector<16x16xf32>
    %49 = arith.subf %45, %48 : vector<16x16xf32>
    %50 = math.exp %49 : vector<16x16xf32>
    %cst_14 = arith.constant dense<0.000000e+00> : vector<16xf32>
    %51 = vector.multi_reduction <add>, %50, %cst_14 [1] : vector<16x16xf32> to vector<16xf32>
    %52 = vector.shape_cast %51 : vector<16xf32> to vector<16x1xf32>
    %53 = tpu.reciprocal %52 : vector<16x1xf32> -> vector<16x1xf32>
    %54 = vector.broadcast %53 : vector<16x1xf32> to vector<16x16xf32>
    %55 = arith.mulf %50, %54 : vector<16x16xf32>
    %56 = vector.extract_strided_slice %11 {offsets = [0, 16], sizes = [16, 16], strides = [1, 1]} : vector<16x64xf32> to vector<16x16xf32>
    %cst_15 = arith.constant dense<0.000000e+00> : vector<16x16xf32>
    %57 = tpu.matmul %55, %56, %cst_15 {dimension_numbers = #tpu.dot_dimension_numbers<[1], [0], [0], [1], [0, 0, 1, 1], [], []>} : vector<16x16xf32>, vector<16x16xf32>, vector<16x16xf32> -> vector<16x16xf32>
    %58 = vector.broadcast %2 : vector<1x16xf32> to vector<16x16xf32>
    %59 = arith.addf %57, %58 : vector<16x16xf32>
    %60 = vector.extract_strided_slice %8 {offsets = [0, 2], sizes = [16, 1], strides = [1, 1]} : vector<16x4xf32> to vector<16x1xf32>
    %61 = vector.extract_strided_slice %10 {offsets = [2, 0], sizes = [1, 16], strides = [1, 1]} : vector<4x16xf32> to vector<1x16xf32>
    %62 = vector.broadcast %60 : vector<16x1xf32> to vector<16x16xf32>
    %63 = vector.broadcast %61 : vector<1x16xf32> to vector<16x16xf32>
    %64 = arith.addf %62, %63 : vector<16x16xf32>
    %cst_16 = arith.constant 0.000000e+00 : f32
    %65 = vector.broadcast %cst_16 : f32 to vector<16x16xf32>
    %66 = arith.cmpf oge, %64, %65 : vector<16x16xf32>
    %cst_17 = arith.constant 2.000000e-01 : f32
    %67 = vector.broadcast %cst_17 : f32 to vector<16x16xf32>
    %68 = arith.mulf %67, %64 : vector<16x16xf32>
    %69 = arith.select %66, %64, %68 : vector<16x16xi1>, vector<16x16xf32>
    %cst_18 = arith.constant dense<0xFF800000> : vector<16xf32>
    %70 = vector.multi_reduction <maximumf>, %69, %cst_18 [1] : vector<16x16xf32> to vector<16xf32>
    %71 = vector.shape_cast %70 : vector<16xf32> to vector<16x1xf32>
    %72 = vector.broadcast %71 : vector<16x1xf32> to vector<16x16xf32>
    %73 = arith.subf %69, %72 : vector<16x16xf32>
    %74 = math.exp %73 : vector<16x16xf32>
    %cst_19 = arith.constant dense<0.000000e+00> : vector<16xf32>
    %75 = vector.multi_reduction <add>, %74, %cst_19 [1] : vector<16x16xf32> to vector<16xf32>
    %76 = vector.shape_cast %75 : vector<16xf32> to vector<16x1xf32>
    %77 = tpu.reciprocal %76 : vector<16x1xf32> -> vector<16x1xf32>
    %78 = vector.broadcast %77 : vector<16x1xf32> to vector<16x16xf32>
    %79 = arith.mulf %74, %78 : vector<16x16xf32>
    %80 = vector.extract_strided_slice %11 {offsets = [0, 32], sizes = [16, 16], strides = [1, 1]} : vector<16x64xf32> to vector<16x16xf32>
    %cst_20 = arith.constant dense<0.000000e+00> : vector<16x16xf32>
    %81 = tpu.matmul %79, %80, %cst_20 {dimension_numbers = #tpu.dot_dimension_numbers<[1], [0], [0], [1], [0, 0, 1, 1], [], []>} : vector<16x16xf32>, vector<16x16xf32>, vector<16x16xf32> -> vector<16x16xf32>
    %82 = vector.broadcast %2 : vector<1x16xf32> to vector<16x16xf32>
    %83 = arith.addf %81, %82 : vector<16x16xf32>
    %84 = vector.extract_strided_slice %8 {offsets = [0, 3], sizes = [16, 1], strides = [1, 1]} : vector<16x4xf32> to vector<16x1xf32>
    %85 = vector.extract_strided_slice %10 {offsets = [3, 0], sizes = [1, 16], strides = [1, 1]} : vector<4x16xf32> to vector<1x16xf32>
    %86 = vector.broadcast %84 : vector<16x1xf32> to vector<16x16xf32>
    %87 = vector.broadcast %85 : vector<1x16xf32> to vector<16x16xf32>
    %88 = arith.addf %86, %87 : vector<16x16xf32>
    %cst_21 = arith.constant 0.000000e+00 : f32
    %89 = vector.broadcast %cst_21 : f32 to vector<16x16xf32>
    %90 = arith.cmpf oge, %88, %89 : vector<16x16xf32>
    %cst_22 = arith.constant 2.000000e-01 : f32
    %91 = vector.broadcast %cst_22 : f32 to vector<16x16xf32>
    %92 = arith.mulf %91, %88 : vector<16x16xf32>
    %93 = arith.select %90, %88, %92 : vector<16x16xi1>, vector<16x16xf32>
    %cst_23 = arith.constant dense<0xFF800000> : vector<16xf32>
    %94 = vector.multi_reduction <maximumf>, %93, %cst_23 [1] : vector<16x16xf32> to vector<16xf32>
    %95 = vector.shape_cast %94 : vector<16xf32> to vector<16x1xf32>
    %96 = vector.broadcast %95 : vector<16x1xf32> to vector<16x16xf32>
    %97 = arith.subf %93, %96 : vector<16x16xf32>
    %98 = math.exp %97 : vector<16x16xf32>
    %cst_24 = arith.constant dense<0.000000e+00> : vector<16xf32>
    %99 = vector.multi_reduction <add>, %98, %cst_24 [1] : vector<16x16xf32> to vector<16xf32>
    %100 = vector.shape_cast %99 : vector<16xf32> to vector<16x1xf32>
    %101 = tpu.reciprocal %100 : vector<16x1xf32> -> vector<16x1xf32>
    %102 = vector.broadcast %101 : vector<16x1xf32> to vector<16x16xf32>
    %103 = arith.mulf %98, %102 : vector<16x16xf32>
    %104 = vector.extract_strided_slice %11 {offsets = [0, 48], sizes = [16, 16], strides = [1, 1]} : vector<16x64xf32> to vector<16x16xf32>
    %cst_25 = arith.constant dense<0.000000e+00> : vector<16x16xf32>
    %105 = tpu.matmul %103, %104, %cst_25 {dimension_numbers = #tpu.dot_dimension_numbers<[1], [0], [0], [1], [0, 0, 1, 1], [], []>} : vector<16x16xf32>, vector<16x16xf32>, vector<16x16xf32> -> vector<16x16xf32>
    %106 = vector.broadcast %2 : vector<1x16xf32> to vector<16x16xf32>
    %107 = arith.addf %105, %106 : vector<16x16xf32>
    %108 = tpu.concatenate %35, %59, %83, %107 in 1 : vector<16x16xf32>, vector<16x16xf32>, vector<16x16xf32>, vector<16x16xf32> -> vector<16x64xf32>
    %c0_26 = arith.constant 0 : index
    %c0_27 = arith.constant 0 : index
    %c0_28 = arith.constant 0 : index
    %109 = vector.load %arg4[%c0_26, %c0_27, %c0_28] : memref<2x16x64xf32, #tpu.memory_space<vmem>>, vector<1x16x64xf32>
    %110 = vector.shape_cast %109 : vector<1x16x64xf32> to vector<16x64xf32>
    %111 = vector.shape_cast %108 : vector<16x64xf32> to vector<1x16x64xf32>
    tpu.vector_store %arg4[%c0_26, %c0_27, %c0_28], %111 {strides = array<i32>} : memref<2x16x64xf32, #tpu.memory_space<vmem>>, vector<1x16x64xf32>,
    %112 = tpu.concatenate %31, %55, %79, %103 in 1 : vector<16x16xf32>, vector<16x16xf32>, vector<16x16xf32>, vector<16x16xf32> -> vector<16x64xf32>
    %c0_29 = arith.constant 0 : index
    %c0_30 = arith.constant 0 : index
    %c0_31 = arith.constant 0 : index
    %113 = vector.load %arg5[%c0_29, %c0_30, %c0_31] : memref<2x16x64xf32, #tpu.memory_space<vmem>>, vector<1x16x64xf32>
    %114 = vector.shape_cast %113 : vector<1x16x64xf32> to vector<16x64xf32>
    %115 = vector.shape_cast %112 : vector<16x64xf32> to vector<1x16x64xf32>
    tpu.vector_store %arg5[%c0_29, %c0_30, %c0_31], %115 {strides = array<i32>} : memref<2x16x64xf32, #tpu.memory_space<vmem>>, vector<1x16x64xf32>,
    %116 = vector.extract_strided_slice %6 {offsets = [16, 0], sizes = [16, 4], strides = [1, 1]} : vector<32x4xf32> to vector<16x4xf32>
    %117 = vector.extract_strided_slice %7 {offsets = [16, 0], sizes = [16, 4], strides = [1, 1]} : vector<32x4xf32> to vector<16x4xf32>
    %118 = tpu.transpose %117, [1, 0] : vector<16x4xf32> -> vector<4x16xf32>
    %119 = vector.extract_strided_slice %5 {offsets = [16, 0], sizes = [16, 64], strides = [1, 1]} : vector<32x64xf32> to vector<16x64xf32>
    %120 = vector.extract_strided_slice %116 {offsets = [0, 0], sizes = [16, 1], strides = [1, 1]} : vector<16x4xf32> to vector<16x1xf32>
    %121 = vector.extract_strided_slice %118 {offsets = [0, 0], sizes = [1, 16], strides = [1, 1]} : vector<4x16xf32> to vector<1x16xf32>
    %122 = vector.broadcast %120 : vector<16x1xf32> to vector<16x16xf32>
    %123 = vector.broadcast %121 : vector<1x16xf32> to vector<16x16xf32>
    %124 = arith.addf %122, %123 : vector<16x16xf32>
    %cst_32 = arith.constant 0.000000e+00 : f32
    %125 = vector.broadcast %cst_32 : f32 to vector<16x16xf32>
    %126 = arith.cmpf oge, %124, %125 : vector<16x16xf32>
    %cst_33 = arith.constant 2.000000e-01 : f32
    %127 = vector.broadcast %cst_33 : f32 to vector<16x16xf32>
    %128 = arith.mulf %127, %124 : vector<16x16xf32>
    %129 = arith.select %126, %124, %128 : vector<16x16xi1>, vector<16x16xf32>
    %cst_34 = arith.constant dense<0xFF800000> : vector<16xf32>
    %130 = vector.multi_reduction <maximumf>, %129, %cst_34 [1] : vector<16x16xf32> to vector<16xf32>
    %131 = vector.shape_cast %130 : vector<16xf32> to vector<16x1xf32>
    %132 = vector.broadcast %131 : vector<16x1xf32> to vector<16x16xf32>
    %133 = arith.subf %129, %132 : vector<16x16xf32>
    %134 = math.exp %133 : vector<16x16xf32>
    %cst_35 = arith.constant dense<0.000000e+00> : vector<16xf32>
    %135 = vector.multi_reduction <add>, %134, %cst_35 [1] : vector<16x16xf32> to vector<16xf32>
    %136 = vector.shape_cast %135 : vector<16xf32> to vector<16x1xf32>
    %137 = tpu.reciprocal %136 : vector<16x1xf32> -> vector<16x1xf32>
    %138 = vector.broadcast %137 : vector<16x1xf32> to vector<16x16xf32>
    %139 = arith.mulf %134, %138 : vector<16x16xf32>
    %140 = vector.extract_strided_slice %119 {offsets = [0, 0], sizes = [16, 16], strides = [1, 1]} : vector<16x64xf32> to vector<16x16xf32>
    %cst_36 = arith.constant dense<0.000000e+00> : vector<16x16xf32>
    %141 = tpu.matmul %139, %140, %cst_36 {dimension_numbers = #tpu.dot_dimension_numbers<[1], [0], [0], [1], [0, 0, 1, 1], [], []>} : vector<16x16xf32>, vector<16x16xf32>, vector<16x16xf32> -> vector<16x16xf32>
    %142 = vector.broadcast %2 : vector<1x16xf32> to vector<16x16xf32>
    %143 = arith.addf %141, %142 : vector<16x16xf32>
    %144 = vector.extract_strided_slice %116 {offsets = [0, 1], sizes = [16, 1], strides = [1, 1]} : vector<16x4xf32> to vector<16x1xf32>
    %145 = vector.extract_strided_slice %118 {offsets = [1, 0], sizes = [1, 16], strides = [1, 1]} : vector<4x16xf32> to vector<1x16xf32>
    %146 = vector.broadcast %144 : vector<16x1xf32> to vector<16x16xf32>
    %147 = vector.broadcast %145 : vector<1x16xf32> to vector<16x16xf32>
    %148 = arith.addf %146, %147 : vector<16x16xf32>
    %cst_37 = arith.constant 0.000000e+00 : f32
    %149 = vector.broadcast %cst_37 : f32 to vector<16x16xf32>
    %150 = arith.cmpf oge, %148, %149 : vector<16x16xf32>
    %cst_38 = arith.constant 2.000000e-01 : f32
    %151 = vector.broadcast %cst_38 : f32 to vector<16x16xf32>
    %152 = arith.mulf %151, %148 : vector<16x16xf32>
    %153 = arith.select %150, %148, %152 : vector<16x16xi1>, vector<16x16xf32>
    %cst_39 = arith.constant dense<0xFF800000> : vector<16xf32>
    %154 = vector.multi_reduction <maximumf>, %153, %cst_39 [1] : vector<16x16xf32> to vector<16xf32>
    %155 = vector.shape_cast %154 : vector<16xf32> to vector<16x1xf32>
    %156 = vector.broadcast %155 : vector<16x1xf32> to vector<16x16xf32>
    %157 = arith.subf %153, %156 : vector<16x16xf32>
    %158 = math.exp %157 : vector<16x16xf32>
    %cst_40 = arith.constant dense<0.000000e+00> : vector<16xf32>
    %159 = vector.multi_reduction <add>, %158, %cst_40 [1] : vector<16x16xf32> to vector<16xf32>
    %160 = vector.shape_cast %159 : vector<16xf32> to vector<16x1xf32>
    %161 = tpu.reciprocal %160 : vector<16x1xf32> -> vector<16x1xf32>
    %162 = vector.broadcast %161 : vector<16x1xf32> to vector<16x16xf32>
    %163 = arith.mulf %158, %162 : vector<16x16xf32>
    %164 = vector.extract_strided_slice %119 {offsets = [0, 16], sizes = [16, 16], strides = [1, 1]} : vector<16x64xf32> to vector<16x16xf32>
    %cst_41 = arith.constant dense<0.000000e+00> : vector<16x16xf32>
    %165 = tpu.matmul %163, %164, %cst_41 {dimension_numbers = #tpu.dot_dimension_numbers<[1], [0], [0], [1], [0, 0, 1, 1], [], []>} : vector<16x16xf32>, vector<16x16xf32>, vector<16x16xf32> -> vector<16x16xf32>
    %166 = vector.broadcast %2 : vector<1x16xf32> to vector<16x16xf32>
    %167 = arith.addf %165, %166 : vector<16x16xf32>
    %168 = vector.extract_strided_slice %116 {offsets = [0, 2], sizes = [16, 1], strides = [1, 1]} : vector<16x4xf32> to vector<16x1xf32>
    %169 = vector.extract_strided_slice %118 {offsets = [2, 0], sizes = [1, 16], strides = [1, 1]} : vector<4x16xf32> to vector<1x16xf32>
    %170 = vector.broadcast %168 : vector<16x1xf32> to vector<16x16xf32>
    %171 = vector.broadcast %169 : vector<1x16xf32> to vector<16x16xf32>
    %172 = arith.addf %170, %171 : vector<16x16xf32>
    %cst_42 = arith.constant 0.000000e+00 : f32
    %173 = vector.broadcast %cst_42 : f32 to vector<16x16xf32>
    %174 = arith.cmpf oge, %172, %173 : vector<16x16xf32>
    %cst_43 = arith.constant 2.000000e-01 : f32
    %175 = vector.broadcast %cst_43 : f32 to vector<16x16xf32>
    %176 = arith.mulf %175, %172 : vector<16x16xf32>
    %177 = arith.select %174, %172, %176 : vector<16x16xi1>, vector<16x16xf32>
    %cst_44 = arith.constant dense<0xFF800000> : vector<16xf32>
    %178 = vector.multi_reduction <maximumf>, %177, %cst_44 [1] : vector<16x16xf32> to vector<16xf32>
    %179 = vector.shape_cast %178 : vector<16xf32> to vector<16x1xf32>
    %180 = vector.broadcast %179 : vector<16x1xf32> to vector<16x16xf32>
    %181 = arith.subf %177, %180 : vector<16x16xf32>
    %182 = math.exp %181 : vector<16x16xf32>
    %cst_45 = arith.constant dense<0.000000e+00> : vector<16xf32>
    %183 = vector.multi_reduction <add>, %182, %cst_45 [1] : vector<16x16xf32> to vector<16xf32>
    %184 = vector.shape_cast %183 : vector<16xf32> to vector<16x1xf32>
    %185 = tpu.reciprocal %184 : vector<16x1xf32> -> vector<16x1xf32>
    %186 = vector.broadcast %185 : vector<16x1xf32> to vector<16x16xf32>
    %187 = arith.mulf %182, %186 : vector<16x16xf32>
    %188 = vector.extract_strided_slice %119 {offsets = [0, 32], sizes = [16, 16], strides = [1, 1]} : vector<16x64xf32> to vector<16x16xf32>
    %cst_46 = arith.constant dense<0.000000e+00> : vector<16x16xf32>
    %189 = tpu.matmul %187, %188, %cst_46 {dimension_numbers = #tpu.dot_dimension_numbers<[1], [0], [0], [1], [0, 0, 1, 1], [], []>} : vector<16x16xf32>, vector<16x16xf32>, vector<16x16xf32> -> vector<16x16xf32>
    %190 = vector.broadcast %2 : vector<1x16xf32> to vector<16x16xf32>
    %191 = arith.addf %189, %190 : vector<16x16xf32>
    %192 = vector.extract_strided_slice %116 {offsets = [0, 3], sizes = [16, 1], strides = [1, 1]} : vector<16x4xf32> to vector<16x1xf32>
    %193 = vector.extract_strided_slice %118 {offsets = [3, 0], sizes = [1, 16], strides = [1, 1]} : vector<4x16xf32> to vector<1x16xf32>
    %194 = vector.broadcast %192 : vector<16x1xf32> to vector<16x16xf32>
    %195 = vector.broadcast %193 : vector<1x16xf32> to vector<16x16xf32>
    %196 = arith.addf %194, %195 : vector<16x16xf32>
    %cst_47 = arith.constant 0.000000e+00 : f32
    %197 = vector.broadcast %cst_47 : f32 to vector<16x16xf32>
    %198 = arith.cmpf oge, %196, %197 : vector<16x16xf32>
    %cst_48 = arith.constant 2.000000e-01 : f32
    %199 = vector.broadcast %cst_48 : f32 to vector<16x16xf32>
    %200 = arith.mulf %199, %196 : vector<16x16xf32>
    %201 = arith.select %198, %196, %200 : vector<16x16xi1>, vector<16x16xf32>
    %cst_49 = arith.constant dense<0xFF800000> : vector<16xf32>
    %202 = vector.multi_reduction <maximumf>, %201, %cst_49 [1] : vector<16x16xf32> to vector<16xf32>
    %203 = vector.shape_cast %202 : vector<16xf32> to vector<16x1xf32>
    %204 = vector.broadcast %203 : vector<16x1xf32> to vector<16x16xf32>
    %205 = arith.subf %201, %204 : vector<16x16xf32>
    %206 = math.exp %205 : vector<16x16xf32>
    %cst_50 = arith.constant dense<0.000000e+00> : vector<16xf32>
    %207 = vector.multi_reduction <add>, %206, %cst_50 [1] : vector<16x16xf32> to vector<16xf32>
    %208 = vector.shape_cast %207 : vector<16xf32> to vector<16x1xf32>
    %209 = tpu.reciprocal %208 : vector<16x1xf32> -> vector<16x1xf32>
    %210 = vector.broadcast %209 : vector<16x1xf32> to vector<16x16xf32>
    %211 = arith.mulf %206, %210 : vector<16x16xf32>
    %212 = vector.extract_strided_slice %119 {offsets = [0, 48], sizes = [16, 16], strides = [1, 1]} : vector<16x64xf32> to vector<16x16xf32>
    %cst_51 = arith.constant dense<0.000000e+00> : vector<16x16xf32>
    %213 = tpu.matmul %211, %212, %cst_51 {dimension_numbers = #tpu.dot_dimension_numbers<[1], [0], [0], [1], [0, 0, 1, 1], [], []>} : vector<16x16xf32>, vector<16x16xf32>, vector<16x16xf32> -> vector<16x16xf32>
    %214 = vector.broadcast %2 : vector<1x16xf32> to vector<16x16xf32>
    %215 = arith.addf %213, %214 : vector<16x16xf32>
    %216 = tpu.concatenate %143, %167, %191, %215 in 1 : vector<16x16xf32>, vector<16x16xf32>, vector<16x16xf32>, vector<16x16xf32> -> vector<16x64xf32>
    %c1 = arith.constant 1 : index
    %c0_52 = arith.constant 0 : index
    %c0_53 = arith.constant 0 : index
    %217 = vector.load %arg4[%c1, %c0_52, %c0_53] : memref<2x16x64xf32, #tpu.memory_space<vmem>>, vector<1x16x64xf32>
    %218 = vector.shape_cast %217 : vector<1x16x64xf32> to vector<16x64xf32>
    %219 = vector.shape_cast %216 : vector<16x64xf32> to vector<1x16x64xf32>
    tpu.vector_store %arg4[%c1, %c0_52, %c0_53], %219 {strides = array<i32>} : memref<2x16x64xf32, #tpu.memory_space<vmem>>, vector<1x16x64xf32>,
    %220 = tpu.concatenate %139, %163, %187, %211 in 1 : vector<16x16xf32>, vector<16x16xf32>, vector<16x16xf32>, vector<16x16xf32> -> vector<16x64xf32>
    %c1_54 = arith.constant 1 : index
    %c0_55 = arith.constant 0 : index
    %c0_56 = arith.constant 0 : index
    %221 = vector.load %arg5[%c1_54, %c0_55, %c0_56] : memref<2x16x64xf32, #tpu.memory_space<vmem>>, vector<1x16x64xf32>
    %222 = vector.shape_cast %221 : vector<1x16x64xf32> to vector<16x64xf32>
    %223 = vector.shape_cast %220 : vector<16x64xf32> to vector<1x16x64xf32>
    tpu.vector_store %arg5[%c1_54, %c0_55, %c0_56], %223 {strides = array<i32>} : memref<2x16x64xf32, #tpu.memory_space<vmem>>, vector<1x16x64xf32>,
    return
  }
  func.func @transform_0(%arg0: i32) -> (i32, i32, i32) {
    %c0_i32 = arith.constant 0 : i32
    %c0_i32_0 = arith.constant 0 : i32
    %c0_i32_1 = arith.constant 0 : i32
    return %arg0, %c0_i32, %c0_i32_0 : i32, i32, i32
  }
  func.func @transform_1(%arg0: i32) -> (i32, i32) {
    %c0_i32 = arith.constant 0 : i32
    %c0_i32_0 = arith.constant 0 : i32
    %c0_i32_1 = arith.constant 0 : i32
    return %c0_i32, %c0_i32_0 : i32, i32
  }
  func.func @transform_2(%arg0: i32) -> (i32, i32) {
    %c0_i32 = arith.constant 0 : i32
    %c0_i32_0 = arith.constant 0 : i32
    %c0_i32_1 = arith.constant 0 : i32
    return %c0_i32, %c0_i32_0 : i32, i32
  }
  func.func @transform_3(%arg0: i32) -> (i32, i32, i32) {
    %c0_i32 = arith.constant 0 : i32
    %c0_i32_0 = arith.constant 0 : i32
    %c0_i32_1 = arith.constant 0 : i32
    return %arg0, %c0_i32, %c0_i32_0 : i32, i32, i32
  }
  func.func @transform_4(%arg0: i32) -> (i32, i32, i32) {
    %c0_i32 = arith.constant 0 : i32
    %c0_i32_0 = arith.constant 0 : i32
    %c0_i32_1 = arith.constant 0 : i32
    return %arg0, %c0_i32, %c0_i32_0 : i32, i32, i32
  }
}

</mosaic_0001>

<llo_original>
// kernel: seq_batch_multi_head_graph_attention.1
$region0: #{seq_batch_multi_head_graph_attention.1}
  #allocation0 [shape = 'u32[]', space=smem, size = 0x4, offset = 0x4, fixed_abs, tag = 'smem constant byte address 0x4 - core index']
  #allocation1 [shape = 'u32[144,128]{1,0:T(1,128)}', space=vmem, size = 0x12000, scoped, tag = 'internal scratch']
  %s0 = inlined_call_operand.vmem [shape: f32[2,16,8], index: 0, kind: input, shape index: {}]
  %s1 = inlined_call_operand.vmem [shape: f32[8,72], index: 1, kind: input, shape index: {}]
  %s2 = inlined_call_operand.vmem [shape: f32[1,16], index: 2, kind: input, shape index: {}]
  %s3 = inlined_call_operand.vmem [shape: f32[2,16,64], index: 3, kind: output, shape index: {0}]
  %s4 = inlined_call_operand.vmem [shape: f32[2,16,64], index: 4, kind: output, shape index: {1}]
  %5 = xla_tuple %s3, %s4
  %s6 = sld [smem:[#allocation0]]
  $region30: #{seq_batch_multi_head_graph_attention.1} parent=0
    _
  %s8 = ssub.s32 1, %s6
  %s9 = scalar_select 0, %s8, %s6
  // Predicated region
  $region2: #{seq_batch_multi_head_graph_attention.1} parent=0 // pred_check
    _
  $region3: #{seq_batch_multi_head_graph_attention.1} parent=0 // pred_check_branch
    %11 = sbr.rel (0) target = $region5
  $region4: #{seq_batch_multi_head_graph_attention.1} parent=0 // pred_region
    _
  $region5: #{seq_batch_multi_head_graph_attention.1} parent=0 // pred_fallthru
    _
  // Predicated region
  $region6: #{seq_batch_multi_head_graph_attention.1} parent=0 // pred_check
    _
  $region7: #{seq_batch_multi_head_graph_attention.1} parent=0 // pred_check_branch
    %13 = sbr.rel (0) target = $region9
  $region8: #{seq_batch_multi_head_graph_attention.1} parent=0 // pred_region
    _
  $region9: #{seq_batch_multi_head_graph_attention.1} parent=0 // pred_fallthru
    _
  // Predicated region
  $region10: #{seq_batch_multi_head_graph_attention.1} parent=0 // pred_check
    _
  $region11: #{seq_batch_multi_head_graph_attention.1} parent=0 // pred_check_branch
    %15 = sbr.rel (0) target = $region13
  $region12: #{seq_batch_multi_head_graph_attention.1} parent=0 // pred_region
    _
  $region13: #{seq_batch_multi_head_graph_attention.1} parent=0 // pred_fallthru
    _
  %v16 = vld [vmem:[%s0] sm:$0xff]
  %v17 = vld [vmem:[%s0 + $0x8] sm:$0xff]
  %v18 = vld [vmem:[%s0 + $0x10] sm:$0xff]
  %v19 = vld [vmem:[%s0 + $0x18] sm:$0xff]
  %v20 = vld [vmem:[%s2] sm:$0x1]
  %v21 = vld [vmem:[%s1] sm:$0xff]
  %vm22 = vcmask 64512
  %v24 = vsel %vm22, %v16, 0
  %v27 = vsel %vm22, %v17, 0
  %v30 = vsel %vm22, %v18, 0
  %v33 = vsel %vm22, %v19, 0
  %35 = vmatprep.subr.mxu0 0.0
  %36 = vmatpush1.msra.mxu0 %v21
  %37 = vmatprep.subr.mxu0 0.0
  %38 = vmatpush1.msra.mxu0 0.0
  %39 = vmatprep.subr.mxu0 0.0
  %40 = vmatpush1.msra.mxu0 0.0
  %41 = vmatprep.subr.mxu0 0.0
  %42 = vmatpush1.msra.mxu0 0.0
  %43 = vmatprep.subr.mxu0 0.0
  %44 = vmatpush1.msra.mxu0 0.0
  %45 = vmatprep.subr.mxu0 0.0
  %46 = vmatpush1.msra.mxu0 0.0
  %47 = vmatprep.subr.mxu0 0.0
  %48 = vmatpush1.msra.mxu0 0.0
  %49 = vmatprep.subr.mxu0 0.0
  %50 = vmatpush1.msra.mxu0 0.0
  %51 = vmatprep.subr.mxu0 0.0
  %52 = vmatpush1.msra.mxu0 0.0
  %53 = vmatprep.subr.mxu0 0.0
  %54 = vmatpush1.msra.mxu0 0.0
  %55 = vmatprep.subr.mxu0 0.0
  %56 = vmatpush1.msra.mxu0 0.0
  %57 = vmatprep.subr.mxu0 0.0
  %58 = vmatpush1.msra.mxu0 0.0
  %59 = vmatprep.subr.mxu0 0.0
  %60 = vmatpush1.msra.mxu0 0.0
  %61 = vmatprep.subr.mxu0 0.0
  %62 = vmatpush1.msra.mxu0 0.0
  %63 = vmatprep.subr.mxu0 0.0
  %64 = vmatpush1.msra.mxu0 0.0
  %65 = vmatprep.subr.mxu0 0.0
  %66 = vmatpush1.msra.mxu0 0.0
  %67 = vmatprep.subr.mxu0 0.0
  %68 = vmatpush1.msra.mxu0 0.0
  %69 = vmatprep.subr.mxu0 0.0
  %70 = vmatpush1.msra.mxu0 0.0
  %71 = vmatprep.subr.mxu0 0.0
  %72 = vmatpush1.msra.mxu0 0.0
  %73 = vmatprep.subr.mxu0 0.0
  %74 = vmatpush1.msra.mxu0 0.0
  %75 = vmatprep.subr.mxu0 0.0
  %76 = vmatpush1.msra.mxu0 0.0
  %77 = vmatprep.subr.mxu0 0.0
  %78 = vmatpush1.msra.mxu0 0.0
  %79 = vmatprep.subr.mxu0 0.0
  %80 = vmatpush1.msra.mxu0 0.0
  %81 = vmatprep.subr.mxu0 0.0
  %82 = vmatpush1.msra.mxu0 0.0
  %83 = vmatprep.subr.mxu0 0.0
  %84 = vmatpush1.msra.mxu0 0.0
  %85 = vmatprep.subr.mxu0 0.0
  %86 = vmatpush1.msra.mxu0 0.0
  %87 = vmatprep.subr.mxu0 0.0
  %88 = vmatpush1.msra.mxu0 0.0
  %89 = vmatprep.subr.mxu0 0.0
  %90 = vmatpush1.msra.mxu0 0.0
  %91 = vmatprep.subr.mxu0 0.0
  %92 = vmatpush1.msra.mxu0 0.0
  %93 = vmatprep.subr.mxu0 0.0
  %94 = vmatpush1.msra.mxu0 0.0
  %95 = vmatprep.subr.mxu0 0.0
  %96 = vmatpush1.msra.mxu0 0.0
  %97 = vmatprep.subr.mxu0 0.0
  %98 = vmatpush1.msra.mxu0 0.0
  %99 = vmatprep.mubr.f32.mxu0 0.0
  %100 = vmatmul.mubr.f32.gmra.mrb[0].mxu0 %v24
  %v101 = vpop.f32.mrb[0].mxu0
  %v102 = vadd.f32 0.0, %v101
  %v103 = vpop.f32.mrb[0].mxu0
  %104 = vmatprep.mubr.f32.mxu0 0.0
  %105 = vmatmul.mubr.f32.gmra.mrb[0].mxu0 %v27
  %v106 = vpop.f32.mrb[0].mxu0
  %v107 = vadd.f32 0.0, %v106
  %v108 = vpop.f32.mrb[0].mxu0
  %109 = vmatprep.mubr.f32.mxu0 0.0
  %110 = vmatmul.mubr.f32.gmra.mrb[0].mxu0 %v30
  %v111 = vpop.f32.mrb[0].mxu0
  %v112 = vadd.f32 0.0, %v111
  %v113 = vpop.f32.mrb[0].mxu0
  %114 = vmatprep.mubr.f32.mxu0 0.0
  %115 = vmatmul.mubr.f32.gmra.mrb[0].mxu0 %v33
  %v116 = vpop.f32.mrb[0].mxu0
  %v117 = vadd.f32 0.0, %v116
  %v118 = vpop.f32.mrb[0].mxu0
  %119 = vdwg.mxu0
  %122 = vrot.lane.b32.xlu0 %v102, 60
  %v123 = vpop.permute.xlu0 %122
  %124 = vrot.lane.b32.xlu0 %v107, 60
  %v125 = vpop.permute.xlu0 %124
  %128 = vxpose.xlu0.b32.start [1/16] %v123, 128
  %129 = vxpose.xlu0.b32.cont [2/16] %v125, 128
  %130 = vxpose.xlu0.b32.cont [3/16] 0.0, 128
  %131 = vxpose.xlu0.b32.cont [4/16] 0.0, 128
  %132 = vxpose.xlu0.b32.cont [5/16] 0.0, 128
  %133 = vxpose.xlu0.b32.cont [6/16] 0.0, 128
  %134 = vxpose.xlu0.b32.cont [7/16] 0.0, 128
  %135 = vxpose.xlu0.b32.cont [8/16] 0.0, 128
  %136 = vxpose.xlu0.b32.cont [9/16] 0.0, 128
  %137 = vxpose.xlu0.b32.cont [10/16] 0.0, 128
  %138 = vxpose.xlu0.b32.cont [11/16] 0.0, 128
  %139 = vxpose.xlu0.b32.cont [12/16] 0.0, 128
  %140 = vxpose.xlu0.b32.cont [13/16] 0.0, 128
  %141 = vxpose.xlu0.b32.cont [14/16] 0.0, 128
  %142 = vxpose.xlu0.b32.cont [15/16] 0.0, 128
  %143 = vxpose.xlu0.b32.end [16/16] 0.0, 128
  %v144 = vpop.trf.xlu0
  %v145 = vpop.trf.xlu0
  %v146 = vpop.trf.xlu0
  %v147 = vpop.trf.xlu0
  %v148 = vpop.trf.xlu0
  %v149 = vpop.trf.xlu0
  %v150 = vpop.trf.xlu0
  %v151 = vpop.trf.xlu0
  %v152 = vpop.trf.xlu0
  %v153 = vpop.trf.xlu0
  %v154 = vpop.trf.xlu0
  %v155 = vpop.trf.xlu0
  %v156 = vpop.trf.xlu0
  %v157 = vpop.trf.xlu0
  %v158 = vpop.trf.xlu0
  %v159 = vpop.trf.xlu0
  %160 = vset.pattern.permute.xlu0 64
  %161 = vperm.xlu0 %160, %v102
  %v162 = vpop.permute.xlu0 %161
  %164 = vset.pattern.permute.xlu0 64
  %165 = vperm.xlu0 %164, %v107
  %v166 = vpop.permute.xlu0 %165
  %v168 = vlaneseq
  %v169 = vshrl.u32 %v168, 7
  %v170 = vsub.s32 0, %v169
  %v171 = vrot.slane %v144, %v170
  %v172 = vadd.f32 %v162, %v171
  %v173 = vadd.f32 %v166, %v171
  %vm174 = vcmp.ge.f32.partialorder %v172, 0.0
  %vm175 = vcmp.ge.f32.partialorder %v173, 0.0
  %v176 = vmul.f32 %v172, 0.2
  %v177 = vmul.f32 %v173, 0.2
  %v178 = vsel %vm174, %v172, %v176
  %v179 = vsel %vm175, %v173, %v177
  %vm180 = vcmask 130048
  %v181 = vsel %vm180, %v178, -inf
  %182 = vmax.xlane.f32.xlu0 %v181
  %v183 = vpop.xlane.xlu0 %182
  %v184 = vsel %vm180, %v179, -inf
  %185 = vmax.xlane.f32.xlu0 %v184
  %v186 = vpop.xlane.xlu0 %185
  %v187 = vsub.f32 %v178, %v183
  %v188 = vsub.f32 %v179, %v186
  %v189 = vmul.f32 %v187, 1.442695
  %v190 = vpow.pop %v189
  %v191 = vmul.f32 %v188, 1.442695
  %v192 = vpow.pop %v191
  %v193 = vsel %vm180, %v190, 0.0
  %194 = vadd.xlane.f32.xlu0 %v193
  %v195 = vpop.xlane.xlu0 %194
  %v196 = vsel %vm180, %v192, 0.0
  %197 = vadd.xlane.f32.xlu0 %v196
  %v198 = vpop.xlane.xlu0 %197
  %v199 = vrcp.pop %v195
  %v200 = vrcp.pop %v198
  %v201 = vmul.f32 %v190, %v199
  %v202 = vmul.f32 %v192, %v200
  %v204 = vlaneseq
  %v205 = vshrl.u32 %v204, 7
  %v206 = vsub.s32 0, %v205
  %v207 = vrot.slane %v20, %v206
  %v210 = vsel %vm180, %v201, 0
  %v213 = vsel %vm180, %v202, 0
  %215 = vmatprep.subr.mxu0 0.0
  %216 = vmatpush1.msra.mxu0 %v102
  %217 = vmatprep.subr.mxu0 0.0
  %218 = vmatpush1.msra.mxu0 %v107
  %219 = vmatprep.subr.mxu0 0.0
  %220 = vmatpush1.msra.mxu0 0.0
  %221 = vmatprep.subr.mxu0 0.0
  %222 = vmatpush1.msra.mxu0 0.0
  %223 = vmatprep.subr.mxu0 0.0
  %224 = vmatpush1.msra.mxu0 0.0
  %225 = vmatprep.subr.mxu0 0.0
  %226 = vmatpush1.msra.mxu0 0.0
  %227 = vmatprep.subr.mxu0 0.0
  %228 = vmatpush1.msra.mxu0 0.0
  %229 = vmatprep.subr.mxu0 0.0
  %230 = vmatpush1.msra.mxu0 0.0
  %231 = vmatprep.subr.mxu0 0.0
  %232 = vmatpush1.msra.mxu0 0.0
  %233 = vmatprep.subr.mxu0 0.0
  %234 = vmatpush1.msra.mxu0 0.0
  %235 = vmatprep.subr.mxu0 0.0
  %236 = vmatpush1.msra.mxu0 0.0
  %237 = vmatprep.subr.mxu0 0.0
  %238 = vmatpush1.msra.mxu0 0.0
  %239 = vmatprep.subr.mxu0 0.0
  %240 = vmatpush1.msra.mxu0 0.0
  %241 = vmatprep.subr.mxu0 0.0
  %242 = vmatpush1.msra.mxu0 0.0
  %243 = vmatprep.subr.mxu0 0.0
  %244 = vmatpush1.msra.mxu0 0.0
  %245 = vmatprep.subr.mxu0 0.0
  %246 = vmatpush1.msra.mxu0 0.0
  %247 = vmatprep.subr.mxu0 0.0
  %248 = vmatpush1.msra.mxu0 0.0
  %249 = vmatprep.subr.mxu0 0.0
  %250 = vmatpush1.msra.mxu0 0.0
  %251 = vmatprep.subr.mxu0 0.0
  %252 = vmatpush1.msra.mxu0 0.0
  %253 = vmatprep.subr.mxu0 0.0
  %254 = vmatpush1.msra.mxu0 0.0
  %255 = vmatprep.subr.mxu0 0.0
  %256 = vmatpush1.msra.mxu0 0.0
  %257 = vmatprep.subr.mxu0 0.0
  %258 = vmatpush1.msra.mxu0 0.0
  %259 = vmatprep.subr.mxu0 0.0
  %260 = vmatpush1.msra.mxu0 0.0
  %261 = vmatprep.subr.mxu0 0.0
  %262 = vmatpush1.msra.mxu0 0.0
  %263 = vmatprep.subr.mxu0 0.0
  %264 = vmatpush1.msra.mxu0 0.0
  %265 = vmatprep.subr.mxu0 0.0
  %266 = vmatpush1.msra.mxu0 0.0
  %267 = vmatprep.subr.mxu0 0.0
  %268 = vmatpush1.msra.mxu0 0.0
  %269 = vmatprep.subr.mxu0 0.0
  %270 = vmatpush1.msra.mxu0 0.0
  %271 = vmatprep.subr.mxu0 0.0
  %272 = vmatpush1.msra.mxu0 0.0
  %273 = vmatprep.subr.mxu0 0.0
  %274 = vmatpush1.msra.mxu0 0.0
  %275 = vmatprep.subr.mxu0 0.0
  %276 = vmatpush1.msra.mxu0 0.0
  %277 = vmatprep.subr.mxu0 0.0
  %278 = vmatpush1.msra.mxu0 0.0
  %279 = vmatprep.mubr.f32.mxu0 0.0
  %280 = vmatmul.mubr.f32.gmra.mrb[0].mxu0 %v210
  %v281 = vpop.f32.mrb[0].mxu0
  %v282 = vadd.f32 %v207, %v281
  %v283 = vpop.f32.mrb[0].mxu0
  %284 = vmatprep.mubr.f32.mxu0 0.0
  %285 = vmatmul.mubr.f32.gmra.mrb[0].mxu0 %v213
  %v286 = vpop.f32.mrb[0].mxu0
  %v287 = vadd.f32 %v207, %v286
  %v288 = vpop.f32.mrb[0].mxu0
  %289 = vdwg.mxu0
  %290 = vset.pattern.permute.xlu0 65
  %291 = vperm.xlu0 %290, %v102
  %v292 = vpop.permute.xlu0 %291
  %294 = vset.pattern.permute.xlu0 65
  %295 = vperm.xlu0 %294, %v107
  %v296 = vpop.permute.xlu0 %295
  %v298 = vlaneseq
  %v299 = vshrl.u32 %v298, 7
  %v300 = vsub.s32 1, %v299
  %v301 = vrot.slane %v144, %v300
  %v302 = vadd.f32 %v292, %v301
  %v303 = vadd.f32 %v296, %v301
  %vm304 = vcmp.ge.f32.partialorder %v302, 0.0
  %vm305 = vcmp.ge.f32.partialorder %v303, 0.0
  %v306 = vmul.f32 %v302, 0.2
  %v307 = vmul.f32 %v303, 0.2
  %v308 = vsel %vm304, %v302, %v306
  %v309 = vsel %vm305, %v303, %v307
  %v310 = vsel %vm180, %v308, -inf
  %311 = vmax.xlane.f32.xlu0 %v310
  %v312 = vpop.xlane.xlu0 %311
  %v313 = vsel %vm180, %v309, -inf
  %314 = vmax.xlane.f32.xlu0 %v313
  %v315 = vpop.xlane.xlu0 %314
  %v316 = vsub.f32 %v308, %v312
  %v317 = vsub.f32 %v309, %v315
  %v318 = vmul.f32 %v316, 1.442695
  %v319 = vpow.pop %v318
  %v320 = vmul.f32 %v317, 1.442695
  %v321 = vpow.pop %v320
  %v322 = vsel %vm180, %v319, 0.0
  %323 = vadd.xlane.f32.xlu0 %v322
  %v324 = vpop.xlane.xlu0 %323
  %v325 = vsel %vm180, %v321, 0.0
  %326 = vadd.xlane.f32.xlu0 %v325
  %v327 = vpop.xlane.xlu0 %326
  %v328 = vrcp.pop %v324
  %v329 = vrcp.pop %v327
  %v330 = vmul.f32 %v319, %v328
  %v331 = vmul.f32 %v321, %v329
  %332 = vrot.lane.b32.xlu0 %v102, 112
  %v333 = vpop.permute.xlu0 %332
  %334 = vrot.lane.b32.xlu0 %v107, 112
  %v335 = vpop.permute.xlu0 %334
  %v339 = vsel %vm180, %v330, 0
  %v342 = vsel %vm180, %v331, 0
  %344 = vmatprep.subr.mxu0 0.0
  %345 = vmatpush1.msra.mxu0 %v333
  %346 = vmatprep.subr.mxu0 0.0
  %347 = vmatpush1.msra.mxu0 %v335
  %348 = vmatprep.subr.mxu0 0.0
  %349 = vmatpush1.msra.mxu0 0.0
  %350 = vmatprep.subr.mxu0 0.0
  %351 = vmatpush1.msra.mxu0 0.0
  %352 = vmatprep.subr.mxu0 0.0
  %353 = vmatpush1.msra.mxu0 0.0
  %354 = vmatprep.subr.mxu0 0.0
  %355 = vmatpush1.msra.mxu0 0.0
  %356 = vmatprep.subr.mxu0 0.0
  %357 = vmatpush1.msra.mxu0 0.0
  %358 = vmatprep.subr.mxu0 0.0
  %359 = vmatpush1.msra.mxu0 0.0
  %360 = vmatprep.subr.mxu0 0.0
  %361 = vmatpush1.msra.mxu0 0.0
  %362 = vmatprep.subr.mxu0 0.0
  %363 = vmatpush1.msra.mxu0 0.0
  %364 = vmatprep.subr.mxu0 0.0
  %365 = vmatpush1.msra.mxu0 0.0
  %366 = vmatprep.subr.mxu0 0.0
  %367 = vmatpush1.msra.mxu0 0.0
  %368 = vmatprep.subr.mxu0 0.0
  %369 = vmatpush1.msra.mxu0 0.0
  %370 = vmatprep.subr.mxu0 0.0
  %371 = vmatpush1.msra.mxu0 0.0
  %372 = vmatprep.subr.mxu0 0.0
  %373 = vmatpush1.msra.mxu0 0.0
  %374 = vmatprep.subr.mxu0 0.0
  %375 = vmatpush1.msra.mxu0 0.0
  %376 = vmatprep.subr.mxu0 0.0
  %377 = vmatpush1.msra.mxu0 0.0
  %378 = vmatprep.subr.mxu0 0.0
  %379 = vmatpush1.msra.mxu0 0.0
  %380 = vmatprep.subr.mxu0 0.0
  %381 = vmatpush1.msra.mxu0 0.0
  %382 = vmatprep.subr.mxu0 0.0
  %383 = vmatpush1.msra.mxu0 0.0
  %384 = vmatprep.subr.mxu0 0.0
  %385 = vmatpush1.msra.mxu0 0.0
  %386 = vmatprep.subr.mxu0 0.0
  %387 = vmatpush1.msra.mxu0 0.0
  %388 = vmatprep.subr.mxu0 0.0
  %389 = vmatpush1.msra.mxu0 0.0
  %390 = vmatprep.subr.mxu0 0.0
  %391 = vmatpush1.msra.mxu0 0.0
  %392 = vmatprep.subr.mxu0 0.0
  %393 = vmatpush1.msra.mxu0 0.0
  %394 = vmatprep.subr.mxu0 0.0
  %395 = vmatpush1.msra.mxu0 0.0
  %396 = vmatprep.subr.mxu0 0.0
  %397 = vmatpush1.msra.mxu0 0.0
  %398 = vmatprep.subr.mxu0 0.0
  %399 = vmatpush1.msra.mxu0 0.0
  %400 = vmatprep.subr.mxu0 0.0
  %401 = vmatpush1.msra.mxu0 0.0
  %402 = vmatprep.subr.mxu0 0.0
  %403 = vmatpush1.msra.mxu0 0.0
  %404 = vmatprep.subr.mxu0 0.0
  %405 = vmatpush1.msra.mxu0 0.0
  %406 = vmatprep.subr.mxu0 0.0
  %407 = vmatpush1.msra.mxu0 0.0
  %408 = vmatprep.mubr.f32.mxu0 0.0
  %409 = vmatmul.mubr.f32.gmra.mrb[0].mxu0 %v339
  %v410 = vpop.f32.mrb[0].mxu0
  %v411 = vadd.f32 %v207, %v410
  %v412 = vpop.f32.mrb[0].mxu0
  %413 = vmatprep.mubr.f32.mxu0 0.0
  %414 = vmatmul.mubr.f32.gmra.mrb[0].mxu0 %v342
  %v415 = vpop.f32.mrb[0].mxu0
  %v416 = vadd.f32 %v207, %v415
  %v417 = vpop.f32.mrb[0].mxu0
  %418 = vdwg.mxu0
  %419 = vset.pattern.permute.xlu0 66
  %420 = vperm.xlu0 %419, %v102
  %v421 = vpop.permute.xlu0 %420
  %423 = vset.pattern.permute.xlu0 66
  %424 = vperm.xlu0 %423, %v107
  %v425 = vpop.permute.xlu0 %424
  %v427 = vlaneseq
  %v428 = vshrl.u32 %v427, 7
  %v429 = vsub.s32 2, %v428
  %v430 = vrot.slane %v144, %v429
  %v431 = vadd.f32 %v421, %v430
  %v432 = vadd.f32 %v425, %v430
  %vm433 = vcmp.ge.f32.partialorder %v431, 0.0
  %vm434 = vcmp.ge.f32.partialorder %v432, 0.0
  %v435 = vmul.f32 %v431, 0.2
  %v436 = vmul.f32 %v432, 0.2
  %v437 = vsel %vm433, %v431, %v435
  %v438 = vsel %vm434, %v432, %v436
  %v439 = vsel %vm180, %v437, -inf
  %440 = vmax.xlane.f32.xlu0 %v439
  %v441 = vpop.xlane.xlu0 %440
  %v442 = vsel %vm180, %v438, -inf
  %443 = vmax.xlane.f32.xlu0 %v442
  %v444 = vpop.xlane.xlu0 %443
  %v445 = vsub.f32 %v437, %v441
  %v446 = vsub.f32 %v438, %v444
  %v447 = vmul.f32 %v445, 1.442695
  %v448 = vpow.pop %v447
  %v449 = vmul.f32 %v446, 1.442695
  %v450 = vpow.pop %v449
  %v451 = vsel %vm180, %v448, 0.0
  %452 = vadd.xlane.f32.xlu0 %v451
  %v453 = vpop.xlane.xlu0 %452
  %v454 = vsel %vm180, %v450, 0.0
  %455 = vadd.xlane.f32.xlu0 %v454
  %v456 = vpop.xlane.xlu0 %455
  %v457 = vrcp.pop %v453
  %v458 = vrcp.pop %v456
  %v459 = vmul.f32 %v448, %v457
  %v460 = vmul.f32 %v450, %v458
  %461 = vrot.lane.b32.xlu0 %v102, 96
  %v462 = vpop.permute.xlu0 %461
  %463 = vrot.lane.b32.xlu0 %v107, 96
  %v464 = vpop.permute.xlu0 %463
  %v468 = vsel %vm180, %v459, 0
  %v471 = vsel %vm180, %v460, 0
  %473 = vmatprep.subr.mxu0 0.0
  %474 = vmatpush1.msra.mxu0 %v462
  %475 = vmatprep.subr.mxu0 0.0
  %476 = vmatpush1.msra.mxu0 %v464
  %477 = vmatprep.subr.mxu0 0.0
  %478 = vmatpush1.msra.mxu0 0.0
  %479 = vmatprep.subr.mxu0 0.0
  %480 = vmatpush1.msra.mxu0 0.0
  %481 = vmatprep.subr.mxu0 0.0
  %482 = vmatpush1.msra.mxu0 0.0
  %483 = vmatprep.subr.mxu0 0.0
  %484 = vmatpush1.msra.mxu0 0.0
  %485 = vmatprep.subr.mxu0 0.0
  %486 = vmatpush1.msra.mxu0 0.0
  %487 = vmatprep.subr.mxu0 0.0
  %488 = vmatpush1.msra.mxu0 0.0
  %489 = vmatprep.subr.mxu0 0.0
  %490 = vmatpush1.msra.mxu0 0.0
  %491 = vmatprep.subr.mxu0 0.0
  %492 = vmatpush1.msra.mxu0 0.0
  %493 = vmatprep.subr.mxu0 0.0
  %494 = vmatpush1.msra.mxu0 0.0
  %495 = vmatprep.subr.mxu0 0.0
  %496 = vmatpush1.msra.mxu0 0.0
  %497 = vmatprep.subr.mxu0 0.0
  %498 = vmatpush1.msra.mxu0 0.0
  %499 = vmatprep.subr.mxu0 0.0
  %500 = vmatpush1.msra.mxu0 0.0
  %501 = vmatprep.subr.mxu0 0.0
  %502 = vmatpush1.msra.mxu0 0.0
  %503 = vmatprep.subr.mxu0 0.0
  %504 = vmatpush1.msra.mxu0 0.0
  %505 = vmatprep.subr.mxu0 0.0
  %506 = vmatpush1.msra.mxu0 0.0
  %507 = vmatprep.subr.mxu0 0.0
  %508 = vmatpush1.msra.mxu0 0.0
  %509 = vmatprep.subr.mxu0 0.0
  %510 = vmatpush1.msra.mxu0 0.0
  %511 = vmatprep.subr.mxu0 0.0
  %512 = vmatpush1.msra.mxu0 0.0
  %513 = vmatprep.subr.mxu0 0.0
  %514 = vmatpush1.msra.mxu0 0.0
  %515 = vmatprep.subr.mxu0 0.0
  %516 = vmatpush1.msra.mxu0 0.0
  %517 = vmatprep.subr.mxu0 0.0
  %518 = vmatpush1.msra.mxu0 0.0
  %519 = vmatprep.subr.mxu0 0.0
  %520 = vmatpush1.msra.mxu0 0.0
  %521 = vmatprep.subr.mxu0 0.0
  %522 = vmatpush1.msra.mxu0 0.0
  %523 = vmatprep.subr.mxu0 0.0
  %524 = vmatpush1.msra.mxu0 0.0
  %525 = vmatprep.subr.mxu0 0.0
  %526 = vmatpush1.msra.mxu0 0.0
  %527 = vmatprep.subr.mxu0 0.0
  %528 = vmatpush1.msra.mxu0 0.0
  %529 = vmatprep.subr.mxu0 0.0
  %530 = vmatpush1.msra.mxu0 0.0
  %531 = vmatprep.subr.mxu0 0.0
  %532 = vmatpush1.msra.mxu0 0.0
  %533 = vmatprep.subr.mxu0 0.0
  %534 = vmatpush1.msra.mxu0 0.0
  %535 = vmatprep.subr.mxu0 0.0
  %536 = vmatpush1.msra.mxu0 0.0
  %537 = vmatprep.mubr.f32.mxu0 0.0
  %538 = vmatmul.mubr.f32.gmra.mrb[0].mxu0 %v468
  %v539 = vpop.f32.mrb[0].mxu0
  %v540 = vadd.f32 %v207, %v539
  %v541 = vpop.f32.mrb[0].mxu0
  %542 = vmatprep.mubr.f32.mxu0 0.0
  %543 = vmatmul.mubr.f32.gmra.mrb[0].mxu0 %v471
  %v544 = vpop.f32.mrb[0].mxu0
  %v545 = vadd.f32 %v207, %v544
  %v546 = vpop.f32.mrb[0].mxu0
  %547 = vdwg.mxu0
  %548 = vset.pattern.permute.xlu0 67
  %549 = vperm.xlu0 %548, %v102
  %v550 = vpop.permute.xlu0 %549
  %552 = vset.pattern.permute.xlu0 67
  %553 = vperm.xlu0 %552, %v107
  %v554 = vpop.permute.xlu0 %553
  %v556 = vlaneseq
  %v557 = vshrl.u32 %v556, 7
  %v558 = vsub.s32 3, %v557
  %v559 = vrot.slane %v144, %v558
  %v560 = vadd.f32 %v550, %v559
  %v561 = vadd.f32 %v554, %v559
  %vm562 = vcmp.ge.f32.partialorder %v560, 0.0
  %vm563 = vcmp.ge.f32.partialorder %v561, 0.0
  %v564 = vmul.f32 %v560, 0.2
  %v565 = vmul.f32 %v561, 0.2
  %v566 = vsel %vm562, %v560, %v564
  %v567 = vsel %vm563, %v561, %v565
  %v568 = vsel %vm180, %v566, -inf
  %569 = vmax.xlane.f32.xlu0 %v568
  %v570 = vpop.xlane.xlu0 %569
  %v571 = vsel %vm180, %v567, -inf
  %572 = vmax.xlane.f32.xlu0 %v571
  %v573 = vpop.xlane.xlu0 %572
  %v574 = vsub.f32 %v566, %v570
  %v575 = vsub.f32 %v567, %v573
  %v576 = vmul.f32 %v574, 1.442695
  %v577 = vpow.pop %v576
  %v578 = vmul.f32 %v575, 1.442695
  %v579 = vpow.pop %v578
  %v580 = vsel %vm180, %v577, 0.0
  %581 = vadd.xlane.f32.xlu0 %v580
  %v582 = vpop.xlane.xlu0 %581
  %v583 = vsel %vm180, %v579, 0.0
  %584 = vadd.xlane.f32.xlu0 %v583
  %v585 = vpop.xlane.xlu0 %584
  %v586 = vrcp.pop %v582
  %v587 = vrcp.pop %v585
  %v588 = vmul.f32 %v577, %v586
  %v589 = vmul.f32 %v579, %v587
  %590 = vrot.lane.b32.xlu0 %v102, 80
  %v591 = vpop.permute.xlu0 %590
  %592 = vrot.lane.b32.xlu0 %v107, 80
  %v593 = vpop.permute.xlu0 %592
  %v597 = vsel %vm180, %v588, 0
  %v600 = vsel %vm180, %v589, 0
  %602 = vmatprep.subr.mxu0 0.0
  %603 = vmatpush1.msra.mxu0 %v591
  %604 = vmatprep.subr.mxu0 0.0
  %605 = vmatpush1.msra.mxu0 %v593
  %606 = vmatprep.subr.mxu0 0.0
  %607 = vmatpush1.msra.mxu0 0.0
  %608 = vmatprep.subr.mxu0 0.0
  %609 = vmatpush1.msra.mxu0 0.0
  %610 = vmatprep.subr.mxu0 0.0
  %611 = vmatpush1.msra.mxu0 0.0
  %612 = vmatprep.subr.mxu0 0.0
  %613 = vmatpush1.msra.mxu0 0.0
  %614 = vmatprep.subr.mxu0 0.0
  %615 = vmatpush1.msra.mxu0 0.0
  %616 = vmatprep.subr.mxu0 0.0
  %617 = vmatpush1.msra.mxu0 0.0
  %618 = vmatprep.subr.mxu0 0.0
  %619 = vmatpush1.msra.mxu0 0.0
  %620 = vmatprep.subr.mxu0 0.0
  %621 = vmatpush1.msra.mxu0 0.0
  %622 = vmatprep.subr.mxu0 0.0
  %623 = vmatpush1.msra.mxu0 0.0
  %624 = vmatprep.subr.mxu0 0.0
  %625 = vmatpush1.msra.mxu0 0.0
  %626 = vmatprep.subr.mxu0 0.0
  %627 = vmatpush1.msra.mxu0 0.0
  %628 = vmatprep.subr.mxu0 0.0
  %629 = vmatpush1.msra.mxu0 0.0
  %630 = vmatprep.subr.mxu0 0.0
  %631 = vmatpush1.msra.mxu0 0.0
  %632 = vmatprep.subr.mxu0 0.0
  %633 = vmatpush1.msra.mxu0 0.0
  %634 = vmatprep.subr.mxu0 0.0
  %635 = vmatpush1.msra.mxu0 0.0
  %636 = vmatprep.subr.mxu0 0.0
  %637 = vmatpush1.msra.mxu0 0.0
  %638 = vmatprep.subr.mxu0 0.0
  %639 = vmatpush1.msra.mxu0 0.0
  %640 = vmatprep.subr.mxu0 0.0
  %641 = vmatpush1.msra.mxu0 0.0
  %642 = vmatprep.subr.mxu0 0.0
  %643 = vmatpush1.msra.mxu0 0.0
  %644 = vmatprep.subr.mxu0 0.0
  %645 = vmatpush1.msra.mxu0 0.0
  %646 = vmatprep.subr.mxu0 0.0
  %647 = vmatpush1.msra.mxu0 0.0
  %648 = vmatprep.subr.mxu0 0.0
  %649 = vmatpush1.msra.mxu0 0.0
  %650 = vmatprep.subr.mxu0 0.0
  %651 = vmatpush1.msra.mxu0 0.0
  %652 = vmatprep.subr.mxu0 0.0
  %653 = vmatpush1.msra.mxu0 0.0
  %654 = vmatprep.subr.mxu0 0.0
  %655 = vmatpush1.msra.mxu0 0.0
  %656 = vmatprep.subr.mxu0 0.0
  %657 = vmatpush1.msra.mxu0 0.0
  %658 = vmatprep.subr.mxu0 0.0
  %659 = vmatpush1.msra.mxu0 0.0
  %660 = vmatprep.subr.mxu0 0.0
  %661 = vmatpush1.msra.mxu0 0.0
  %662 = vmatprep.subr.mxu0 0.0
  %663 = vmatpush1.msra.mxu0 0.0
  %664 = vmatprep.subr.mxu0 0.0
  %665 = vmatpush1.msra.mxu0 0.0
  %666 = vmatprep.mubr.f32.mxu0 0.0
  %667 = vmatmul.mubr.f32.gmra.mrb[0].mxu0 %v597
  %v668 = vpop.f32.mrb[0].mxu0
  %v669 = vadd.f32 %v207, %v668
  %v670 = vpop.f32.mrb[0].mxu0
  %671 = vmatprep.mubr.f32.mxu0 0.0
  %672 = vmatmul.mubr.f32.gmra.mrb[0].mxu0 %v600
  %v673 = vpop.f32.mrb[0].mxu0
  %v674 = vadd.f32 %v207, %v673
  %v675 = vpop.f32.mrb[0].mxu0
  %676 = vdwg.mxu0
  %679 = vrot.lane.b32.xlu0 %v411, 16
  %v680 = vpop.permute.xlu0 %679
  %681 = vrot.lane.b32.xlu0 %v416, 16
  %v682 = vpop.permute.xlu0 %681
  %687 = vrot.lane.b32.xlu0 %v540, 32
  %v688 = vpop.permute.xlu0 %687
  %689 = vrot.lane.b32.xlu0 %v545, 32
  %v690 = vpop.permute.xlu0 %689
  %695 = vrot.lane.b32.xlu0 %v669, 48
  %v696 = vpop.permute.xlu0 %695
  %697 = vrot.lane.b32.xlu0 %v674, 48
  %v698 = vpop.permute.xlu0 %697
  %v701 = vsel %vm180, %v282, %v680
  %v702 = vsel %vm180, %v287, %v682
  %vm703 = vcmask 261120
  %v704 = vsel %vm703, %v701, %v688
  %v705 = vsel %vm703, %v702, %v690
  %vm706 = vcmask 392192
  %v707 = vsel %vm706, %v704, %v696
  %v708 = vsel %vm706, %v705, %v698
  %vm709 = vcmask 523264
  %710 = vst.msk [vmem:[%s3] sm:$0xff] %vm709, %v707
  %711 = vst.msk [vmem:[%s3 + $0x8] sm:$0xff] %vm709, %v708
  %712 = vrot.lane.b32.xlu0 %v330, 16
  %v713 = vpop.permute.xlu0 %712
  %714 = vrot.lane.b32.xlu0 %v331, 16
  %v715 = vpop.permute.xlu0 %714
  %718 = vrot.lane.b32.xlu0 %v459, 32
  %v719 = vpop.permute.xlu0 %718
  %720 = vrot.lane.b32.xlu0 %v460, 32
  %v721 = vpop.permute.xlu0 %720
  %724 = vrot.lane.b32.xlu0 %v588, 48
  %v725 = vpop.permute.xlu0 %724
  %726 = vrot.lane.b32.xlu0 %v589, 48
  %v727 = vpop.permute.xlu0 %726
  %v730 = vsel %vm180, %v201, %v713
  %v731 = vsel %vm180, %v202, %v715
  %v732 = vsel %vm703, %v730, %v719
  %v733 = vsel %vm703, %v731, %v721
  %v734 = vsel %vm706, %v732, %v725
  %v735 = vsel %vm706, %v733, %v727
  %736 = vst.msk [vmem:[%s4] sm:$0xff] %vm709, %v734
  %737 = vst.msk [vmem:[%s4 + $0x8] sm:$0xff] %vm709, %v735
  %740 = vrot.lane.b32.xlu0 %v112, 60
  %v741 = vpop.permute.xlu0 %740
  %742 = vrot.lane.b32.xlu0 %v117, 60
  %v743 = vpop.permute.xlu0 %742
  %746 = vxpose.xlu0.b32.start [1/16] %v741, 128
  %747 = vxpose.xlu0.b32.cont [2/16] %v743, 128
  %748 = vxpose.xlu0.b32.cont [3/16] 0.0, 128
  %749 = vxpose.xlu0.b32.cont [4/16] 0.0, 128
  %750 = vxpose.xlu0.b32.cont [5/16] 0.0, 128
  %751 = vxpose.xlu0.b32.cont [6/16] 0.0, 128
  %752 = vxpose.xlu0.b32.cont [7/16] 0.0, 128
  %753 = vxpose.xlu0.b32.cont [8/16] 0.0, 128
  %754 = vxpose.xlu0.b32.cont [9/16] 0.0, 128
  %755 = vxpose.xlu0.b32.cont [10/16] 0.0, 128
  %756 = vxpose.xlu0.b32.cont [11/16] 0.0, 128
  %757 = vxpose.xlu0.b32.cont [12/16] 0.0, 128
  %758 = vxpose.xlu0.b32.cont [13/16] 0.0, 128
  %759 = vxpose.xlu0.b32.cont [14/16] 0.0, 128
  %760 = vxpose.xlu0.b32.cont [15/16] 0.0, 128
  %761 = vxpose.xlu0.b32.end [16/16] 0.0, 128
  %v762 = vpop.trf.xlu0
  %v763 = vpop.trf.xlu0
  %v764 = vpop.trf.xlu0
  %v765 = vpop.trf.xlu0
  %v766 = vpop.trf.xlu0
  %v767 = vpop.trf.xlu0
  %v768 = vpop.trf.xlu0
  %v769 = vpop.trf.xlu0
  %v770 = vpop.trf.xlu0
  %v771 = vpop.trf.xlu0
  %v772 = vpop.trf.xlu0
  %v773 = vpop.trf.xlu0
  %v774 = vpop.trf.xlu0
  %v775 = vpop.trf.xlu0
  %v776 = vpop.trf.xlu0
  %v777 = vpop.trf.xlu0
  %778 = vset.pattern.permute.xlu0 64
  %779 = vperm.xlu0 %778, %v112
  %v780 = vpop.permute.xlu0 %779
  %782 = vset.pattern.permute.xlu0 64
  %783 = vperm.xlu0 %782, %v117
  %v784 = vpop.permute.xlu0 %783
  %v786 = vlaneseq
  %v787 = vshrl.u32 %v786, 7
  %v788 = vsub.s32 0, %v787
  %v789 = vrot.slane %v762, %v788
  %v790 = vadd.f32 %v780, %v789
  %v791 = vadd.f32 %v784, %v789
  %vm792 = vcmp.ge.f32.partialorder %v790, 0.0
  %vm793 = vcmp.ge.f32.partialorder %v791, 0.0
  %v794 = vmul.f32 %v790, 0.2
  %v795 = vmul.f32 %v791, 0.2
  %v796 = vsel %vm792, %v790, %v794
  %v797 = vsel %vm793, %v791, %v795
  %v798 = vsel %vm180, %v796, -inf
  %799 = vmax.xlane.f32.xlu0 %v798
  %v800 = vpop.xlane.xlu0 %799
  %v801 = vsel %vm180, %v797, -inf
  %802 = vmax.xlane.f32.xlu0 %v801
  %v803 = vpop.xlane.xlu0 %802
  %v804 = vsub.f32 %v796, %v800
  %v805 = vsub.f32 %v797, %v803
  %v806 = vmul.f32 %v804, 1.442695
  %v807 = vpow.pop %v806
  %v808 = vmul.f32 %v805, 1.442695
  %v809 = vpow.pop %v808
  %v810 = vsel %vm180, %v807, 0.0
  %811 = vadd.xlane.f32.xlu0 %v810
  %v812 = vpop.xlane.xlu0 %811
  %v813 = vsel %vm180, %v809, 0.0
  %814 = vadd.xlane.f32.xlu0 %v813
  %v815 = vpop.xlane.xlu0 %814
  %v816 = vrcp.pop %v812
  %v817 = vrcp.pop %v815
  %v818 = vmul.f32 %v807, %v816
  %v819 = vmul.f32 %v809, %v817
  %v821 = vsel %vm180, %v818, 0
  %v824 = vsel %vm180, %v819, 0
  %826 = vmatprep.subr.mxu0 0.0
  %827 = vmatpush1.msra.mxu0 %v112
  %828 = vmatprep.subr.mxu0 0.0
  %829 = vmatpush1.msra.mxu0 %v117
  %830 = vmatprep.subr.mxu0 0.0
  %831 = vmatpush1.msra.mxu0 0.0
  %832 = vmatprep.subr.mxu0 0.0
  %833 = vmatpush1.msra.mxu0 0.0
  %834 = vmatprep.subr.mxu0 0.0
  %835 = vmatpush1.msra.mxu0 0.0
  %836 = vmatprep.subr.mxu0 0.0
  %837 = vmatpush1.msra.mxu0 0.0
  %838 = vmatprep.subr.mxu0 0.0
  %839 = vmatpush1.msra.mxu0 0.0
  %840 = vmatprep.subr.mxu0 0.0
  %841 = vmatpush1.msra.mxu0 0.0
  %842 = vmatprep.subr.mxu0 0.0
  %843 = vmatpush1.msra.mxu0 0.0
  %844 = vmatprep.subr.mxu0 0.0
  %845 = vmatpush1.msra.mxu0 0.0
  %846 = vmatprep.subr.mxu0 0.0
  %847 = vmatpush1.msra.mxu0 0.0
  %848 = vmatprep.subr.mxu0 0.0
  %849 = vmatpush1.msra.mxu0 0.0
  %850 = vmatprep.subr.mxu0 0.0
  %851 = vmatpush1.msra.mxu0 0.0
  %852 = vmatprep.subr.mxu0 0.0
  %853 = vmatpush1.msra.mxu0 0.0
  %854 = vmatprep.subr.mxu0 0.0
  %855 = vmatpush1.msra.mxu0 0.0
  %856 = vmatprep.subr.mxu0 0.0
  %857 = vmatpush1.msra.mxu0 0.0
  %858 = vmatprep.subr.mxu0 0.0
  %859 = vmatpush1.msra.mxu0 0.0
  %860 = vmatprep.subr.mxu0 0.0
  %861 = vmatpush1.msra.mxu0 0.0
  %862 = vmatprep.subr.mxu0 0.0
  %863 = vmatpush1.msra.mxu0 0.0
  %864 = vmatprep.subr.mxu0 0.0
  %865 = vmatpush1.msra.mxu0 0.0
  %866 = vmatprep.subr.mxu0 0.0
  %867 = vmatpush1.msra.mxu0 0.0
  %868 = vmatprep.subr.mxu0 0.0
  %869 = vmatpush1.msra.mxu0 0.0
  %870 = vmatprep.subr.mxu0 0.0
  %871 = vmatpush1.msra.mxu0 0.0
  %872 = vmatprep.subr.mxu0 0.0
  %873 = vmatpush1.msra.mxu0 0.0
  %874 = vmatprep.subr.mxu0 0.0
  %875 = vmatpush1.msra.mxu0 0.0
  %876 = vmatprep.subr.mxu0 0.0
  %877 = vmatpush1.msra.mxu0 0.0
  %878 = vmatprep.subr.mxu0 0.0
  %879 = vmatpush1.msra.mxu0 0.0
  %880 = vmatprep.subr.mxu0 0.0
  %881 = vmatpush1.msra.mxu0 0.0
  %882 = vmatprep.subr.mxu0 0.0
  %883 = vmatpush1.msra.mxu0 0.0
  %884 = vmatprep.subr.mxu0 0.0
  %885 = vmatpush1.msra.mxu0 0.0
  %886 = vmatprep.subr.mxu0 0.0
  %887 = vmatpush1.msra.mxu0 0.0
  %888 = vmatprep.subr.mxu0 0.0
  %889 = vmatpush1.msra.mxu0 0.0
  %890 = vmatprep.mubr.f32.mxu0 0.0
  %891 = vmatmul.mubr.f32.gmra.mrb[0].mxu0 %v821
  %v892 = vpop.f32.mrb[0].mxu0
  %v893 = vadd.f32 %v207, %v892
  %v894 = vpop.f32.mrb[0].mxu0
  %895 = vmatprep.mubr.f32.mxu0 0.0
  %896 = vmatmul.mubr.f32.gmra.mrb[0].mxu0 %v824
  %v897 = vpop.f32.mrb[0].mxu0
  %v898 = vadd.f32 %v207, %v897
  %v899 = vpop.f32.mrb[0].mxu0
  %900 = vdwg.mxu0
  %901 = vset.pattern.permute.xlu0 65
  %902 = vperm.xlu0 %901, %v112
  %v903 = vpop.permute.xlu0 %902
  %905 = vset.pattern.permute.xlu0 65
  %906 = vperm.xlu0 %905, %v117
  %v907 = vpop.permute.xlu0 %906
  %v909 = vlaneseq
  %v910 = vshrl.u32 %v909, 7
  %v911 = vsub.s32 1, %v910
  %v912 = vrot.slane %v762, %v911
  %v913 = vadd.f32 %v903, %v912
  %v914 = vadd.f32 %v907, %v912
  %vm915 = vcmp.ge.f32.partialorder %v913, 0.0
  %vm916 = vcmp.ge.f32.partialorder %v914, 0.0
  %v917 = vmul.f32 %v913, 0.2
  %v918 = vmul.f32 %v914, 0.2
  %v919 = vsel %vm915, %v913, %v917
  %v920 = vsel %vm916, %v914, %v918
  %v921 = vsel %vm180, %v919, -inf
  %922 = vmax.xlane.f32.xlu0 %v921
  %v923 = vpop.xlane.xlu0 %922
  %v924 = vsel %vm180, %v920, -inf
  %925 = vmax.xlane.f32.xlu0 %v924
  %v926 = vpop.xlane.xlu0 %925
  %v927 = vsub.f32 %v919, %v923
  %v928 = vsub.f32 %v920, %v926
  %v929 = vmul.f32 %v927, 1.442695
  %v930 = vpow.pop %v929
  %v931 = vmul.f32 %v928, 1.442695
  %v932 = vpow.pop %v931
  %v933 = vsel %vm180, %v930, 0.0
  %934 = vadd.xlane.f32.xlu0 %v933
  %v935 = vpop.xlane.xlu0 %934
  %v936 = vsel %vm180, %v932, 0.0
  %937 = vadd.xlane.f32.xlu0 %v936
  %v938 = vpop.xlane.xlu0 %937
  %v939 = vrcp.pop %v935
  %v940 = vrcp.pop %v938
  %v941 = vmul.f32 %v930, %v939
  %v942 = vmul.f32 %v932, %v940
  %943 = vrot.lane.b32.xlu0 %v112, 112
  %v944 = vpop.permute.xlu0 %943
  %945 = vrot.lane.b32.xlu0 %v117, 112
  %v946 = vpop.permute.xlu0 %945
  %v950 = vsel %vm180, %v941, 0
  %v953 = vsel %vm180, %v942, 0
  %955 = vmatprep.subr.mxu0 0.0
  %956 = vmatpush1.msra.mxu0 %v944
  %957 = vmatprep.subr.mxu0 0.0
  %958 = vmatpush1.msra.mxu0 %v946
  %959 = vmatprep.subr.mxu0 0.0
  %960 = vmatpush1.msra.mxu0 0.0
  %961 = vmatprep.subr.mxu0 0.0
  %962 = vmatpush1.msra.mxu0 0.0
  %963 = vmatprep.subr.mxu0 0.0
  %964 = vmatpush1.msra.mxu0 0.0
  %965 = vmatprep.subr.mxu0 0.0
  %966 = vmatpush1.msra.mxu0 0.0
  %967 = vmatprep.subr.mxu0 0.0
  %968 = vmatpush1.msra.mxu0 0.0
  %969 = vmatprep.subr.mxu0 0.0
  %970 = vmatpush1.msra.mxu0 0.0
  %971 = vmatprep.subr.mxu0 0.0
  %972 = vmatpush1.msra.mxu0 0.0
  %973 = vmatprep.subr.mxu0 0.0
  %974 = vmatpush1.msra.mxu0 0.0
  %975 = vmatprep.subr.mxu0 0.0
  %976 = vmatpush1.msra.mxu0 0.0
  %977 = vmatprep.subr.mxu0 0.0
  %978 = vmatpush1.msra.mxu0 0.0
  %979 = vmatprep.subr.mxu0 0.0
  %980 = vmatpush1.msra.mxu0 0.0
  %981 = vmatprep.subr.mxu0 0.0
  %982 = vmatpush1.msra.mxu0 0.0
  %983 = vmatprep.subr.mxu0 0.0
  %984 = vmatpush1.msra.mxu0 0.0
  %985 = vmatprep.subr.mxu0 0.0
  %986 = vmatpush1.msra.mxu0 0.0
  %987 = vmatprep.subr.mxu0 0.0
  %988 = vmatpush1.msra.mxu0 0.0
  %989 = vmatprep.subr.mxu0 0.0
  %990 = vmatpush1.msra.mxu0 0.0
  %991 = vmatprep.subr.mxu0 0.0
  %992 = vmatpush1.msra.mxu0 0.0
  %993 = vmatprep.subr.mxu0 0.0
  %994 = vmatpush1.msra.mxu0 0.0
  %995 = vmatprep.subr.mxu0 0.0
  %996 = vmatpush1.msra.mxu0 0.0
  %997 = vmatprep.subr.mxu0 0.0
  %998 = vmatpush1.msra.mxu0 0.0
  %999 = vmatprep.subr.mxu0 0.0
  %1000 = vmatpush1.msra.mxu0 0.0
  %1001 = vmatprep.subr.mxu0 0.0
  %1002 = vmatpush1.msra.mxu0 0.0
  %1003 = vmatprep.subr.mxu0 0.0
  %1004 = vmatpush1.msra.mxu0 0.0
  %1005 = vmatprep.subr.mxu0 0.0
  %1006 = vmatpush1.msra.mxu0 0.0
  %1007 = vmatprep.subr.mxu0 0.0
  %1008 = vmatpush1.msra.mxu0 0.0
  %1009 = vmatprep.subr.mxu0 0.0
  %1010 = vmatpush1.msra.mxu0 0.0
  %1011 = vmatprep.subr.mxu0 0.0
  %1012 = vmatpush1.msra.mxu0 0.0
  %1013 = vmatprep.subr.mxu0 0.0
  %1014 = vmatpush1.msra.mxu0 0.0
  %1015 = vmatprep.subr.mxu0 0.0
  %1016 = vmatpush1.msra.mxu0 0.0
  %1017 = vmatprep.subr.mxu0 0.0
  %1018 = vmatpush1.msra.mxu0 0.0
  %1019 = vmatprep.mubr.f32.mxu0 0.0
  %1020 = vmatmul.mubr.f32.gmra.mrb[0].mxu0 %v950
  %v1021 = vpop.f32.mrb[0].mxu0
  %v1022 = vadd.f32 %v207, %v1021
  %v1023 = vpop.f32.mrb[0].mxu0
  %1024 = vmatprep.mubr.f32.mxu0 0.0
  %1025 = vmatmul.mubr.f32.gmra.mrb[0].mxu0 %v953
  %v1026 = vpop.f32.mrb[0].mxu0
  %v1027 = vadd.f32 %v207, %v1026
  %v1028 = vpop.f32.mrb[0].mxu0
  %1029 = vdwg.mxu0
  %1030 = vset.pattern.permute.xlu0 66
  %1031 = vperm.xlu0 %1030, %v112
  %v1032 = vpop.permute.xlu0 %1031
  %1034 = vset.pattern.permute.xlu0 66
  %1035 = vperm.xlu0 %1034, %v117
  %v1036 = vpop.permute.xlu0 %1035
  %v1038 = vlaneseq
  %v1039 = vshrl.u32 %v1038, 7
  %v1040 = vsub.s32 2, %v1039
  %v1041 = vrot.slane %v762, %v1040
  %v1042 = vadd.f32 %v1032, %v1041
  %v1043 = vadd.f32 %v1036, %v1041
  %vm1044 = vcmp.ge.f32.partialorder %v1042, 0.0
  %vm1045 = vcmp.ge.f32.partialorder %v1043, 0.0
  %v1046 = vmul.f32 %v1042, 0.2
  %v1047 = vmul.f32 %v1043, 0.2
  %v1048 = vsel %vm1044, %v1042, %v1046
  %v1049 = vsel %vm1045, %v1043, %v1047
  %v1050 = vsel %vm180, %v1048, -inf
  %1051 = vmax.xlane.f32.xlu0 %v1050
  %v1052 = vpop.xlane.xlu0 %1051
  %v1053 = vsel %vm180, %v1049, -inf
  %1054 = vmax.xlane.f32.xlu0 %v1053
  %v1055 = vpop.xlane.xlu0 %1054
  %v1056 = vsub.f32 %v1048, %v1052
  %v1057 = vsub.f32 %v1049, %v1055
  %v1058 = vmul.f32 %v1056, 1.442695
  %v1059 = vpow.pop %v1058
  %v1060 = vmul.f32 %v1057, 1.442695
  %v1061 = vpow.pop %v1060
  %v1062 = vsel %vm180, %v1059, 0.0
  %1063 = vadd.xlane.f32.xlu0 %v1062
  %v1064 = vpop.xlane.xlu0 %1063
  %v1065 = vsel %vm180, %v1061, 0.0
  %1066 = vadd.xlane.f32.xlu0 %v1065
  %v1067 = vpop.xlane.xlu0 %1066
  %v1068 = vrcp.pop %v1064
  %v1069 = vrcp.pop %v1067
  %v1070 = vmul.f32 %v1059, %v1068
  %v1071 = vmul.f32 %v1061, %v1069
  %1072 = vrot.lane.b32.xlu0 %v112, 96
  %v1073 = vpop.permute.xlu0 %1072
  %1074 = vrot.lane.b32.xlu0 %v117, 96
  %v1075 = vpop.permute.xlu0 %1074
  %v1079 = vsel %vm180, %v1070, 0
  %v1082 = vsel %vm180, %v1071, 0
  %1084 = vmatprep.subr.mxu0 0.0
  %1085 = vmatpush1.msra.mxu0 %v1073
  %1086 = vmatprep.subr.mxu0 0.0
  %1087 = vmatpush1.msra.mxu0 %v1075
  %1088 = vmatprep.subr.mxu0 0.0
  %1089 = vmatpush1.msra.mxu0 0.0
  %1090 = vmatprep.subr.mxu0 0.0
  %1091 = vmatpush1.msra.mxu0 0.0
  %1092 = vmatprep.subr.mxu0 0.0
  %1093 = vmatpush1.msra.mxu0 0.0
  %1094 = vmatprep.subr.mxu0 0.0
  %1095 = vmatpush1.msra.mxu0 0.0
  %1096 = vmatprep.subr.mxu0 0.0
  %1097 = vmatpush1.msra.mxu0 0.0
  %1098 = vmatprep.subr.mxu0 0.0
  %1099 = vmatpush1.msra.mxu0 0.0
  %1100 = vmatprep.subr.mxu0 0.0
  %1101 = vmatpush1.msra.mxu0 0.0
  %1102 = vmatprep.subr.mxu0 0.0
  %1103 = vmatpush1.msra.mxu0 0.0
  %1104 = vmatprep.subr.mxu0 0.0
  %1105 = vmatpush1.msra.mxu0 0.0
  %1106 = vmatprep.subr.mxu0 0.0
  %1107 = vmatpush1.msra.mxu0 0.0
  %1108 = vmatprep.subr.mxu0 0.0
  %1109 = vmatpush1.msra.mxu0 0.0
  %1110 = vmatprep.subr.mxu0 0.0
  %1111 = vmatpush1.msra.mxu0 0.0
  %1112 = vmatprep.subr.mxu0 0.0
  %1113 = vmatpush1.msra.mxu0 0.0
  %1114 = vmatprep.subr.mxu0 0.0
  %1115 = vmatpush1.msra.mxu0 0.0
  %1116 = vmatprep.subr.mxu0 0.0
  %1117 = vmatpush1.msra.mxu0 0.0
  %1118 = vmatprep.subr.mxu0 0.0
  %1119 = vmatpush1.msra.mxu0 0.0
  %1120 = vmatprep.subr.mxu0 0.0
  %1121 = vmatpush1.msra.mxu0 0.0
  %1122 = vmatprep.subr.mxu0 0.0
  %1123 = vmatpush1.msra.mxu0 0.0
  %1124 = vmatprep.subr.mxu0 0.0
  %1125 = vmatpush1.msra.mxu0 0.0
  %1126 = vmatprep.subr.mxu0 0.0
  %1127 = vmatpush1.msra.mxu0 0.0
  %1128 = vmatprep.subr.mxu0 0.0
  %1129 = vmatpush1.msra.mxu0 0.0
  %1130 = vmatprep.subr.mxu0 0.0
  %1131 = vmatpush1.msra.mxu0 0.0
  %1132 = vmatprep.subr.mxu0 0.0
  %1133 = vmatpush1.msra.mxu0 0.0
  %1134 = vmatprep.subr.mxu0 0.0
  %1135 = vmatpush1.msra.mxu0 0.0
  %1136 = vmatprep.subr.mxu0 0.0
  %1137 = vmatpush1.msra.mxu0 0.0
  %1138 = vmatprep.subr.mxu0 0.0
  %1139 = vmatpush1.msra.mxu0 0.0
  %1140 = vmatprep.subr.mxu0 0.0
  %1141 = vmatpush1.msra.mxu0 0.0
  %1142 = vmatprep.subr.mxu0 0.0
  %1143 = vmatpush1.msra.mxu0 0.0
  %1144 = vmatprep.subr.mxu0 0.0
  %1145 = vmatpush1.msra.mxu0 0.0
  %1146 = vmatprep.subr.mxu0 0.0
  %1147 = vmatpush1.msra.mxu0 0.0
  %1148 = vmatprep.mubr.f32.mxu0 0.0
  %1149 = vmatmul.mubr.f32.gmra.mrb[0].mxu0 %v1079
  %v1150 = vpop.f32.mrb[0].mxu0
  %v1151 = vadd.f32 %v207, %v1150
  %v1152 = vpop.f32.mrb[0].mxu0
  %1153 = vmatprep.mubr.f32.mxu0 0.0
  %1154 = vmatmul.mubr.f32.gmra.mrb[0].mxu0 %v1082
  %v1155 = vpop.f32.mrb[0].mxu0
  %v1156 = vadd.f32 %v207, %v1155
  %v1157 = vpop.f32.mrb[0].mxu0
  %1158 = vdwg.mxu0
  %1159 = vset.pattern.permute.xlu0 67
  %1160 = vperm.xlu0 %1159, %v112
  %v1161 = vpop.permute.xlu0 %1160
  %1163 = vset.pattern.permute.xlu0 67
  %1164 = vperm.xlu0 %1163, %v117
  %v1165 = vpop.permute.xlu0 %1164
  %v1167 = vlaneseq
  %v1168 = vshrl.u32 %v1167, 7
  %v1169 = vsub.s32 3, %v1168
  %v1170 = vrot.slane %v762, %v1169
  %v1171 = vadd.f32 %v1161, %v1170
  %v1172 = vadd.f32 %v1165, %v1170
  %vm1173 = vcmp.ge.f32.partialorder %v1171, 0.0
  %vm1174 = vcmp.ge.f32.partialorder %v1172, 0.0
  %v1175 = vmul.f32 %v1171, 0.2
  %v1176 = vmul.f32 %v1172, 0.2
  %v1177 = vsel %vm1173, %v1171, %v1175
  %v1178 = vsel %vm1174, %v1172, %v1176
  %v1179 = vsel %vm180, %v1177, -inf
  %1180 = vmax.xlane.f32.xlu0 %v1179
  %v1181 = vpop.xlane.xlu0 %1180
  %v1182 = vsel %vm180, %v1178, -inf
  %1183 = vmax.xlane.f32.xlu0 %v1182
  %v1184 = vpop.xlane.xlu0 %1183
  %v1185 = vsub.f32 %v1177, %v1181
  %v1186 = vsub.f32 %v1178, %v1184
  %v1187 = vmul.f32 %v1185, 1.442695
  %v1188 = vpow.pop %v1187
  %v1189 = vmul.f32 %v1186, 1.442695
  %v1190 = vpow.pop %v1189
  %v1191 = vsel %vm180, %v1188, 0.0
  %1192 = vadd.xlane.f32.xlu0 %v1191
  %v1193 = vpop.xlane.xlu0 %1192
  %v1194 = vsel %vm180, %v1190, 0.0
  %1195 = vadd.xlane.f32.xlu0 %v1194
  %v1196 = vpop.xlane.xlu0 %1195
  %v1197 = vrcp.pop %v1193
  %v1198 = vrcp.pop %v1196
  %v1199 = vmul.f32 %v1188, %v1197
  %v1200 = vmul.f32 %v1190, %v1198
  %1201 = vrot.lane.b32.xlu0 %v112, 80
  %v1202 = vpop.permute.xlu0 %1201
  %1203 = vrot.lane.b32.xlu0 %v117, 80
  %v1204 = vpop.permute.xlu0 %1203
  %v1208 = vsel %vm180, %v1199, 0
  %v1211 = vsel %vm180, %v1200, 0
  %1213 = vmatprep.subr.mxu0 0.0
  %1214 = vmatpush1.msra.mxu0 %v1202
  %1215 = vmatprep.subr.mxu0 0.0
  %1216 = vmatpush1.msra.mxu0 %v1204
  %1217 = vmatprep.subr.mxu0 0.0
  %1218 = vmatpush1.msra.mxu0 0.0
  %1219 = vmatprep.subr.mxu0 0.0
  %1220 = vmatpush1.msra.mxu0 0.0
  %1221 = vmatprep.subr.mxu0 0.0
  %1222 = vmatpush1.msra.mxu0 0.0
  %1223 = vmatprep.subr.mxu0 0.0
  %1224 = vmatpush1.msra.mxu0 0.0
  %1225 = vmatprep.subr.mxu0 0.0
  %1226 = vmatpush1.msra.mxu0 0.0
  %1227 = vmatprep.subr.mxu0 0.0
  %1228 = vmatpush1.msra.mxu0 0.0
  %1229 = vmatprep.subr.mxu0 0.0
  %1230 = vmatpush1.msra.mxu0 0.0
  %1231 = vmatprep.subr.mxu0 0.0
  %1232 = vmatpush1.msra.mxu0 0.0
  %1233 = vmatprep.subr.mxu0 0.0
  %1234 = vmatpush1.msra.mxu0 0.0
  %1235 = vmatprep.subr.mxu0 0.0
  %1236 = vmatpush1.msra.mxu0 0.0
  %1237 = vmatprep.subr.mxu0 0.0
  %1238 = vmatpush1.msra.mxu0 0.0
  %1239 = vmatprep.subr.mxu0 0.0
  %1240 = vmatpush1.msra.mxu0 0.0
  %1241 = vmatprep.subr.mxu0 0.0
  %1242 = vmatpush1.msra.mxu0 0.0
  %1243 = vmatprep.subr.mxu0 0.0
  %1244 = vmatpush1.msra.mxu0 0.0
  %1245 = vmatprep.subr.mxu0 0.0
  %1246 = vmatpush1.msra.mxu0 0.0
  %1247 = vmatprep.subr.mxu0 0.0
  %1248 = vmatpush1.msra.mxu0 0.0
  %1249 = vmatprep.subr.mxu0 0.0
  %1250 = vmatpush1.msra.mxu0 0.0
  %1251 = vmatprep.subr.mxu0 0.0
  %1252 = vmatpush1.msra.mxu0 0.0
  %1253 = vmatprep.subr.mxu0 0.0
  %1254 = vmatpush1.msra.mxu0 0.0
  %1255 = vmatprep.subr.mxu0 0.0
  %1256 = vmatpush1.msra.mxu0 0.0
  %1257 = vmatprep.subr.mxu0 0.0
  %1258 = vmatpush1.msra.mxu0 0.0
  %1259 = vmatprep.subr.mxu0 0.0
  %1260 = vmatpush1.msra.mxu0 0.0
  %1261 = vmatprep.subr.mxu0 0.0
  %1262 = vmatpush1.msra.mxu0 0.0
  %1263 = vmatprep.subr.mxu0 0.0
  %1264 = vmatpush1.msra.mxu0 0.0
  %1265 = vmatprep.subr.mxu0 0.0
  %1266 = vmatpush1.msra.mxu0 0.0
  %1267 = vmatprep.subr.mxu0 0.0
  %1268 = vmatpush1.msra.mxu0 0.0
  %1269 = vmatprep.subr.mxu0 0.0
  %1270 = vmatpush1.msra.mxu0 0.0
  %1271 = vmatprep.subr.mxu0 0.0
  %1272 = vmatpush1.msra.mxu0 0.0
  %1273 = vmatprep.subr.mxu0 0.0
  %1274 = vmatpush1.msra.mxu0 0.0
  %1275 = vmatprep.subr.mxu0 0.0
  %1276 = vmatpush1.msra.mxu0 0.0
  %1277 = vmatprep.mubr.f32.mxu0 0.0
  %1278 = vmatmul.mubr.f32.gmra.mrb[0].mxu0 %v1208
  %v1279 = vpop.f32.mrb[0].mxu0
  %v1280 = vadd.f32 %v207, %v1279
  %v1281 = vpop.f32.mrb[0].mxu0
  %1282 = vmatprep.mubr.f32.mxu0 0.0
  %1283 = vmatmul.mubr.f32.gmra.mrb[0].mxu0 %v1211
  %v1284 = vpop.f32.mrb[0].mxu0
  %v1285 = vadd.f32 %v207, %v1284
  %v1286 = vpop.f32.mrb[0].mxu0
  %1287 = vdwg.mxu0
  %1290 = vrot.lane.b32.xlu0 %v1022, 16
  %v1291 = vpop.permute.xlu0 %1290
  %1292 = vrot.lane.b32.xlu0 %v1027, 16
  %v1293 = vpop.permute.xlu0 %1292
  %1298 = vrot.lane.b32.xlu0 %v1151, 32
  %v1299 = vpop.permute.xlu0 %1298
  %1300 = vrot.lane.b32.xlu0 %v1156, 32
  %v1301 = vpop.permute.xlu0 %1300
  %1306 = vrot.lane.b32.xlu0 %v1280, 48
  %v1307 = vpop.permute.xlu0 %1306
  %1308 = vrot.lane.b32.xlu0 %v1285, 48
  %v1309 = vpop.permute.xlu0 %1308
  %v1312 = vsel %vm180, %v893, %v1291
  %v1313 = vsel %vm180, %v898, %v1293
  %v1314 = vsel %vm703, %v1312, %v1299
  %v1315 = vsel %vm703, %v1313, %v1301
  %v1316 = vsel %vm706, %v1314, %v1307
  %v1317 = vsel %vm706, %v1315, %v1309
  %s1318 = scalar_lea.vmem %s3, 16
  %1319 = vst.msk [vmem:[%s1318] sm:$0xff] %vm709, %v1316
  %1320 = vst.msk [vmem:[%s1318 + $0x8] sm:$0xff] %vm709, %v1317
  %1321 = vrot.lane.b32.xlu0 %v941, 16
  %v1322 = vpop.permute.xlu0 %1321
  %1323 = vrot.lane.b32.xlu0 %v942, 16
  %v1324 = vpop.permute.xlu0 %1323
  %1327 = vrot.lane.b32.xlu0 %v1070, 32
  %v1328 = vpop.permute.xlu0 %1327
  %1329 = vrot.lane.b32.xlu0 %v1071, 32
  %v1330 = vpop.permute.xlu0 %1329
  %1333 = vrot.lane.b32.xlu0 %v1199, 48
  %v1334 = vpop.permute.xlu0 %1333
  %1335 = vrot.lane.b32.xlu0 %v1200, 48
  %v1336 = vpop.permute.xlu0 %1335
  %v1339 = vsel %vm180, %v818, %v1322
  %v1340 = vsel %vm180, %v819, %v1324
  %v1341 = vsel %vm703, %v1339, %v1328
  %v1342 = vsel %vm703, %v1340, %v1330
  %v1343 = vsel %vm706, %v1341, %v1334
  %v1344 = vsel %vm706, %v1342, %v1336
  %s1345 = scalar_lea.vmem %s4, 16
  %1346 = vst.msk [vmem:[%s1345] sm:$0xff] %vm709, %v1343
  %1347 = vst.msk [vmem:[%s1345 + $0x8] sm:$0xff] %vm709, %v1344
  // Predicated region
  $region14: #{seq_batch_multi_head_graph_attention.1} parent=0 // pred_check
    _
  $region15: #{seq_batch_multi_head_graph_attention.1} parent=0 // pred_check_branch
    %1349 = sbr.rel (0) target = $region17
  $region16: #{seq_batch_multi_head_graph_attention.1} parent=0 // pred_region
    _
  $region17: #{seq_batch_multi_head_graph_attention.1} parent=0 // pred_fallthru
    _
  // Predicated region
  $region18: #{seq_batch_multi_head_graph_attention.1} parent=0 // pred_check
    _
  $region19: #{seq_batch_multi_head_graph_attention.1} parent=0 // pred_check_branch
    %1351 = sbr.rel (0) target = $region21
  $region20: #{seq_batch_multi_head_graph_attention.1} parent=0 // pred_region
    _
  $region21: #{seq_batch_multi_head_graph_attention.1} parent=0 // pred_fallthru
    _
  // Predicated region
  $region22: #{seq_batch_multi_head_graph_attention.1} parent=0 // pred_check
    _
  $region23: #{seq_batch_multi_head_graph_attention.1} parent=0 // pred_check_branch
    %1353 = sbr.rel (0) target = $region25
  $region24: #{seq_batch_multi_head_graph_attention.1} parent=0 // pred_region
    _
  $region25: #{seq_batch_multi_head_graph_attention.1} parent=0 // pred_fallthru
    _
  // Predicated region
  $region26: #{seq_batch_multi_head_graph_attention.1} parent=0 // pred_check
    _
  $region27: #{seq_batch_multi_head_graph_attention.1} parent=0 // pred_check_branch
    %1355 = sbr.rel (0) target = $region29
  $region28: #{seq_batch_multi_head_graph_attention.1} parent=0 // pred_region
    _
  $region29: #{seq_batch_multi_head_graph_attention.1} parent=0 // pred_fallthru
    _

</llo_original>
